<compile_context>
chip_gen: v6e
topology: v6e:2x2x1
jax: 0.10.0
libtpu: 0.0.40
codegen_flags: <defaults>
</compile_context>

<pallas_src>
import functools

import jax
import jax.numpy as jnp
from jax.experimental import pallas as pl
from jax.experimental.pallas import tpu as pltpu

LANE = 128      # lane width (last dim)
SUBLANE = 8     # f32 sublane width (second-to-last dim)


def _round_up(n, m):
    return ((n + m - 1) // m) * m


# ---------------------------------------------------------------------------
# Fused MLP kernel: chains all Linear(+ReLU) layers inside one kernel body.
# refs = (x_ref, bias_stack_ref, w0_ref, ..., w{L-1}_ref, o_ref).
# layer_meta = ((fo_pad, relu), ...) is static, so the chain is fully unrolled and
# the intermediate activations stay kernel-local (a handful of vregs).
# ---------------------------------------------------------------------------
def _fused_mlp_kernel(*refs, layer_meta, compute_dtype):
    x_ref = refs[0]
    b_ref = refs[1]
    w_refs = refs[2:-1]
    o_ref = refs[-1]

    h = x_ref[...]                                          # (TB, fi0_pad) f32
    for i, (fo_pad, relu) in enumerate(layer_meta):
        w = w_refs[i][...]                                  # (fi_pad, fo_pad) compute_dtype
        b = b_ref[pl.ds(i, 1), pl.ds(0, fo_pad)]            # (1, fo_pad) f32
        # MXU matmul; accumulation in f32 regardless of compute dtype.
        h = jnp.dot(h.astype(compute_dtype), w,
                    preferred_element_type=jnp.float32) + b
        if relu:
            h = jnp.maximum(h, 0.0)
    o_ref[...] = h


# ---------------------------------------------------------------------------
# One-time preparation of a Linear(+ReLU) chain: per-layer lane-dense padding.
# layers: list of (w (fi, fo) f32, b (fo,) f32, relu: bool)
# ---------------------------------------------------------------------------
def prepare_chain(layers, compute_dtype=jnp.float32):
    dims = []
    weights = []
    for w, b, relu in layers:
        fi, fo = int(w.shape[0]), int(w.shape[1])
        fi_p, fo_p = _round_up(fi, LANE), _round_up(fo, LANE)
        w_p = (jnp.zeros((fi_p, fo_p), jnp.float32)
               .at[:fi, :fo].set(w.astype(jnp.float32))
               .astype(compute_dtype))
        weights.append(w_p)
        dims.append((fi, fo, fi_p, fo_p, bool(relu)))

    max_fo_p = max(d[3] for d in dims)
    bias_stack = jnp.zeros((len(layers), max_fo_p), jnp.float32)
    for i, (_, b, _) in enumerate(layers):
        bias_stack = bias_stack.at[i, :b.shape[0]].set(b.astype(jnp.float32))

    return {
        "weights": tuple(weights),
        "bias_stack": bias_stack,
        "dims": tuple(dims),
        "compute_dtype": compute_dtype,
    }


# ---------------------------------------------------------------------------
# Run a prepared chain on x with a single pallas_call (grid over the batch).
# ---------------------------------------------------------------------------
def run_chain(prepared, x):
    dims = prepared["dims"]
    weights = prepared["weights"]
    bias_stack = prepared["bias_stack"]
    compute_dtype = prepared["compute_dtype"]
    cbytes = jnp.dtype(compute_dtype).itemsize

    B, in_f = x.shape
    assert in_f == dims[0][0], (in_f, dims[0][0])
    out_f = dims[-1][1]
    fi0_p = dims[0][2]
    fol_p = dims[-1][3]

    # --- VMEM budget / batch-tile selection --------------------------------
    try:
        vmem_cap = int(pltpu.get_tpu_info().vmem_capacity_bytes)
    except Exception:
        vmem_cap = 64 * 1024 * 1024    # conservative (v7x per-TC)
    budget = int(vmem_cap * 0.6)

    widest = max(max(d[2], d[3]) for d in dims)

    def vmem_est(tb, n_weight_buffers):
        w_bytes = sum(fi_p * fo_p for _, _, fi_p, fo_p, _ in dims) * cbytes * n_weight_buffers
        bias_bytes = bias_stack.size * 4 * n_weight_buffers
        io_bytes = tb * (fi0_p + fol_p) * 4 * 2          # double-buffered x / out tiles
        inter_bytes = tb * widest * 4 * 3                # live matmul intermediates
        return w_bytes + bias_bytes + io_bytes + inter_bytes

    tb = SUBLANE
    for cand in (512, 384, 256, 128, 64, 32, 16, 8):
        if cand > max(_round_up(B, SUBLANE), SUBLANE):
            continue
        if vmem_est(cand, 1) <= budget:
            tb = cand
            break
    # TODO(synk): if vmem_est(8, 1) still exceeds the budget (very wide layers on
    # v7x), stream the weights layer-by-layer (memory_space=pl.ANY +
    # pltpu.emit_pipeline) instead of keeping the full stack VMEM-resident.

    b_pad = _round_up(B, tb)

    # Only x is padded per call (weights/biases were pre-padded at prepare time).
    x_p = jnp.pad(x.astype(jnp.float32), ((0, b_pad - B), (0, fi0_p - in_f)))

    # Scheduler hint consistent with what actually runs (padded dims everywhere).
    flops = sum(2 * b_pad * fi_p * fo_p for _, _, fi_p, fo_p, _ in dims)
    bytes_accessed = (4 * (x_p.size + bias_stack.size + b_pad * fol_p)
                      + cbytes * sum(int(w.size) for w in weights))

    layer_meta = tuple((fo_p, relu) for _, _, _, fo_p, relu in dims)
    kernel = functools.partial(_fused_mlp_kernel,
                               layer_meta=layer_meta,
                               compute_dtype=compute_dtype)

    def build_and_call(single_buffer_resident):
        resident_kwargs = {}
        if single_buffer_resident:
            # Weights/bias block index never changes -> no need for double buffering.
            resident_kwargs = dict(pipeline_mode=pl.Buffered(1))

        in_specs = [pl.BlockSpec((tb, fi0_p), lambda i: (i, 0),
                                 memory_space=pltpu.MemorySpace.VMEM)]
        in_specs.append(pl.BlockSpec(tuple(bias_stack.shape), lambda i: (0, 0),
                                     memory_space=pltpu.MemorySpace.VMEM,
                                     **resident_kwargs))
        for (_, _, fi_p, fo_p, _) in dims:
            in_specs.append(pl.BlockSpec((fi_p, fo_p), lambda i: (0, 0),
                                         memory_space=pltpu.MemorySpace.VMEM,
                                         **resident_kwargs))

        est = vmem_est(tb, 1 if single_buffer_resident else 2)
        vmem_limit = int(min(max(est * 1.5 + (2 << 20), 32 << 20),
                             vmem_cap * 3 // 4))

        return pl.pallas_call(
            kernel,
            out_shape=jax.ShapeDtypeStruct((b_pad, fol_p), jnp.float32),
            grid=(b_pad // tb,),
            in_specs=in_specs,
            out_specs=pl.BlockSpec((tb, fol_p), lambda i: (i, 0),
                                   memory_space=pltpu.MemorySpace.VMEM),
            compiler_params=pltpu.CompilerParams(
                dimension_semantics=("parallel",),
                vmem_limit_bytes=vmem_limit),
            cost_estimate=pl.CostEstimate(flops=flops, transcendentals=0,
                                          bytes_accessed=bytes_accessed),
        )(x_p, bias_stack, *weights)

    try:
        out_p = build_and_call(True)
    except Exception:
        # Older runtimes without pipeline_mode / Buffered(1) support.
        out_p = build_and_call(False)

    return out_p[:B, :out_f]


# ---------------------------------------------------------------------------
# Parameter construction (mirrors nn.Linear shapes from AUTOCODER.__init__).
# ---------------------------------------------------------------------------
def autocoder_layer_sizes(vect_length, num_layer, code_length):
    ds = (vect_length / code_length) ** (1.0 / num_layer)
    enc = []
    for i in range(num_layer - 1):
        enc.append((int(vect_length // ds ** i), int(vect_length // ds ** (i + 1))))
    enc.append((int(vect_length // ds ** (num_layer - 1)), code_length))
    dec = []
    for i in range(num_layer - 1):
        dec.append((int(code_length * ds ** i), int(code_length * ds ** (i + 1))))
    dec.append((int(code_length * ds ** (num_layer - 1)), vect_length))
    return enc, dec


def init_params(key, layer_sizes):
    params = []
    for fan_in, fan_out in layer_sizes:
        kw, kb, key = jax.random.split(key, 3)
        # PyTorch nn.Linear default: U(-1/sqrt(fan_in), 1/sqrt(fan_in))
        bound = 1.0 / (fan_in ** 0.5)
        w = jax.random.uniform(kw, (fan_in, fan_out), jnp.float32, -bound, bound)
        b = jax.random.uniform(kb, (fan_out,), jnp.float32, -bound, bound)
        params.append((w, b))
    return params, key


def _mlp_layers(params):
    # ReLU after every layer except the last of this (sub-)network, as in nn.Sequential.
    n = len(params)
    return [(w, b, i < n - 1) for i, (w, b) in enumerate(params)]


def prepare_autocoder(enc_params, dec_params, compute_dtype=jnp.float32):
    """Pre-pad all weights/biases ONCE for the three coder modes."""
    return {
        "enc": prepare_chain(_mlp_layers(enc_params), compute_dtype),
        "dec": prepare_chain(_mlp_layers(dec_params), compute_dtype),
        "both": prepare_chain(_mlp_layers(enc_params) + _mlp_layers(dec_params),
                              compute_dtype),
    }


def autocoder_forward(x, prepared, coder=2, training=True):
    # Note: for tiny batches (B <= ~64) a plain XLA dot chain is equally fast; the
    # fused Pallas path pays off once the batch tile reaches the MXU's M dimension.
    if training and coder == 2:
        return run_chain(prepared["both"], x)    # decoder(encoder(x)), no ReLU at the seam
    elif coder == 0:
        return run_chain(prepared["enc"], x)
    elif coder == 1:
        return run_chain(prepared["dec"], x)
    return None


if __name__ == "__main__":
    # vect_length=64, num_layer=3, code_length=8 -> encoder 64->32->16->8,
    # decoder 8->16->32->64.
    VECT_LENGTH, NUM_LAYER, CODE_LENGTH = 64, 3, 8
    BATCH = 8

    enc_sizes, dec_sizes = autocoder_layer_sizes(VECT_LENGTH, NUM_LAYER, CODE_LENGTH)

    key = jax.random.PRNGKey(0)
    enc_params, key = init_params(key, enc_sizes)
    dec_params, key = init_params(key, dec_sizes)
    kx, key = jax.random.split(key)
    x = jax.random.normal(kx, (BATCH, VECT_LENGTH), jnp.float32)

    prepared_f32 = prepare_autocoder(enc_params, dec_params, jnp.float32)

    # plain-JAX reference (HIGHEST precision so it is true f32)
    def ref_mlp(xv, params):
        n = len(params)
        for i, (w, b) in enumerate(params):
            xv = jnp.dot(xv, w, precision=jax.lax.Precision.HIGHEST) + b
            if i < n - 1:
                xv = jnp.maximum(xv, 0.0)
        return xv

    def rel_err(a, b):
        return float(jnp.linalg.norm(a - b) / (jnp.linalg.norm(b) + 1e-12))

    # training / coder==2 path: decoder(encoder(x)) in ONE fused Pallas kernel.
    out = jax.block_until_ready(autocoder_forward(x, prepared_f32, coder=2, training=True))
    assert out.shape == (BATCH, VECT_LENGTH), out.shape
    ref = ref_mlp(ref_mlp(x, enc_params), dec_params)
    assert rel_err(out, ref) < 2e-2, rel_err(out, ref)

    # coder==0 (encode only) and coder==1 (decode only)
    code = jax.block_until_ready(autocoder_forward(x, prepared_f32, coder=0))
    assert code.shape == (BATCH, CODE_LENGTH)
    assert rel_err(code, ref_mlp(x, enc_params)) < 2e-2

    dec = jax.block_until_ready(autocoder_forward(code, prepared_f32, coder=1))
    assert dec.shape == (BATCH, VECT_LENGTH)
    assert rel_err(dec, ref_mlp(code, dec_params)) < 2e-2

    # Larger batch exercising batch tiling across grid steps.
    kx2, key = jax.random.split(key)
    xb = jax.random.normal(kx2, (256, VECT_LENGTH), jnp.float32)
    outb = jax.block_until_ready(autocoder_forward(xb, prepared_f32, coder=2, training=True))
    refb = ref_mlp(ref_mlp(xb, enc_params), dec_params)
    assert outb.shape == (256, VECT_LENGTH)
    assert rel_err(outb, refb) < 2e-2

    # bf16-MXU path (v6e/v7x friendly). Numerics drift vs the f32 reference,
    # so only check shape / finiteness and a loose norm bound.
    prepared_bf16 = prepare_autocoder(enc_params, dec_params, jnp.bfloat16)
    out_bf16 = jax.block_until_ready(
        autocoder_forward(xb, prepared_bf16, coder=2, training=True))
    assert out_bf16.shape == refb.shape
    assert bool(jnp.all(jnp.isfinite(out_bf16)))
    assert rel_err(out_bf16, refb) < 1e-1

    print("KERNEL_OK")
</pallas_src>

<mosaic_0001>
module attributes {stable_mosaic.version = 11 : i64} {
  func.func @_fused_mlp_kernel(%arg0: i32, %arg1: memref<8x128xf32, #tpu.memory_space<vmem>>, %arg2: memref<6x128xf32, #tpu.memory_space<vmem>>, %arg3: memref<128x128xf32, #tpu.memory_space<vmem>>, %arg4: memref<128x128xf32, #tpu.memory_space<vmem>>, %arg5: memref<128x128xf32, #tpu.memory_space<vmem>>, %arg6: memref<128x128xf32, #tpu.memory_space<vmem>>, %arg7: memref<128x128xf32, #tpu.memory_space<vmem>>, %arg8: memref<128x128xf32, #tpu.memory_space<vmem>>, %arg9: memref<8x128xf32, #tpu.memory_space<vmem>>) attributes {dimension_semantics = [#tpu.dimension_semantics<parallel>], iteration_bounds = array<i64: 1>, scalar_prefetch = 0 : i64, scratch_operands = 0 : i64, tpu.core_type = #tpu.core_type<tc>, window_params = [{transform_indices = @transform_0, window_bounds = array<i64: 8, 128>}, {pipeline_mode = #tpu.pipeline_mode<synchronous>, transform_indices = @transform_1, window_bounds = array<i64: 6, 128>}, {pipeline_mode = #tpu.pipeline_mode<synchronous>, transform_indices = @transform_2, window_bounds = array<i64: 128, 128>}, {pipeline_mode = #tpu.pipeline_mode<synchronous>, transform_indices = @transform_3, window_bounds = array<i64: 128, 128>}, {pipeline_mode = #tpu.pipeline_mode<synchronous>, transform_indices = @transform_4, window_bounds = array<i64: 128, 128>}, {pipeline_mode = #tpu.pipeline_mode<synchronous>, transform_indices = @transform_5, window_bounds = array<i64: 128, 128>}, {pipeline_mode = #tpu.pipeline_mode<synchronous>, transform_indices = @transform_6, window_bounds = array<i64: 128, 128>}, {pipeline_mode = #tpu.pipeline_mode<synchronous>, transform_indices = @transform_7, window_bounds = array<i64: 128, 128>}, {transform_indices = @transform_8, window_bounds = array<i64: 8, 128>}]} {
    %c0 = arith.constant 0 : index
    %c0_0 = arith.constant 0 : index
    %0 = vector.load %arg1[%c0, %c0_0] : memref<8x128xf32, #tpu.memory_space<vmem>>, vector<8x128xf32>
    %c0_1 = arith.constant 0 : index
    %c0_2 = arith.constant 0 : index
    %1 = vector.load %arg3[%c0_1, %c0_2] : memref<128x128xf32, #tpu.memory_space<vmem>>, vector<128x128xf32>
    %c0_3 = arith.constant 0 : index
    %c0_4 = arith.constant 0 : index
    %2 = vector.load %arg2[%c0_3, %c0_4] : memref<6x128xf32, #tpu.memory_space<vmem>>, vector<1x128xf32>
    %cst = arith.constant dense<0.000000e+00> : vector<8x128xf32>
    %3 = tpu.matmul %0, %1, %cst {dimension_numbers = #tpu.dot_dimension_numbers<[1], [0], [0], [1], [0, 0, 1, 1], [], []>} : vector<8x128xf32>, vector<128x128xf32>, vector<8x128xf32> -> vector<8x128xf32>
    %4 = vector.broadcast %2 : vector<1x128xf32> to vector<8x128xf32>
    %5 = arith.addf %3, %4 : vector<8x128xf32>
    %cst_5 = arith.constant 0.000000e+00 : f32
    %6 = vector.broadcast %cst_5 : f32 to vector<8x128xf32>
    %7 = arith.maximumf %5, %6 : vector<8x128xf32>
    %c0_6 = arith.constant 0 : index
    %c0_7 = arith.constant 0 : index
    %8 = vector.load %arg4[%c0_6, %c0_7] : memref<128x128xf32, #tpu.memory_space<vmem>>, vector<128x128xf32>
    %c1 = arith.constant 1 : index
    %c0_8 = arith.constant 0 : index
    %9 = vector.load %arg2[%c1, %c0_8] : memref<6x128xf32, #tpu.memory_space<vmem>>, vector<1x128xf32>
    %cst_9 = arith.constant dense<0.000000e+00> : vector<8x128xf32>
    %10 = tpu.matmul %7, %8, %cst_9 {dimension_numbers = #tpu.dot_dimension_numbers<[1], [0], [0], [1], [0, 0, 1, 1], [], []>} : vector<8x128xf32>, vector<128x128xf32>, vector<8x128xf32> -> vector<8x128xf32>
    %11 = vector.broadcast %9 : vector<1x128xf32> to vector<8x128xf32>
    %12 = arith.addf %10, %11 : vector<8x128xf32>
    %cst_10 = arith.constant 0.000000e+00 : f32
    %13 = vector.broadcast %cst_10 : f32 to vector<8x128xf32>
    %14 = arith.maximumf %12, %13 : vector<8x128xf32>
    %c0_11 = arith.constant 0 : index
    %c0_12 = arith.constant 0 : index
    %15 = vector.load %arg5[%c0_11, %c0_12] : memref<128x128xf32, #tpu.memory_space<vmem>>, vector<128x128xf32>
    %c2 = arith.constant 2 : index
    %c0_13 = arith.constant 0 : index
    %16 = vector.load %arg2[%c2, %c0_13] : memref<6x128xf32, #tpu.memory_space<vmem>>, vector<1x128xf32>
    %cst_14 = arith.constant dense<0.000000e+00> : vector<8x128xf32>
    %17 = tpu.matmul %14, %15, %cst_14 {dimension_numbers = #tpu.dot_dimension_numbers<[1], [0], [0], [1], [0, 0, 1, 1], [], []>} : vector<8x128xf32>, vector<128x128xf32>, vector<8x128xf32> -> vector<8x128xf32>
    %18 = vector.broadcast %16 : vector<1x128xf32> to vector<8x128xf32>
    %19 = arith.addf %17, %18 : vector<8x128xf32>
    %c0_15 = arith.constant 0 : index
    %c0_16 = arith.constant 0 : index
    %20 = vector.load %arg6[%c0_15, %c0_16] : memref<128x128xf32, #tpu.memory_space<vmem>>, vector<128x128xf32>
    %c3 = arith.constant 3 : index
    %c0_17 = arith.constant 0 : index
    %21 = vector.load %arg2[%c3, %c0_17] : memref<6x128xf32, #tpu.memory_space<vmem>>, vector<1x128xf32>
    %cst_18 = arith.constant dense<0.000000e+00> : vector<8x128xf32>
    %22 = tpu.matmul %19, %20, %cst_18 {dimension_numbers = #tpu.dot_dimension_numbers<[1], [0], [0], [1], [0, 0, 1, 1], [], []>} : vector<8x128xf32>, vector<128x128xf32>, vector<8x128xf32> -> vector<8x128xf32>
    %23 = vector.broadcast %21 : vector<1x128xf32> to vector<8x128xf32>
    %24 = arith.addf %22, %23 : vector<8x128xf32>
    %cst_19 = arith.constant 0.000000e+00 : f32
    %25 = vector.broadcast %cst_19 : f32 to vector<8x128xf32>
    %26 = arith.maximumf %24, %25 : vector<8x128xf32>
    %c0_20 = arith.constant 0 : index
    %c0_21 = arith.constant 0 : index
    %27 = vector.load %arg7[%c0_20, %c0_21] : memref<128x128xf32, #tpu.memory_space<vmem>>, vector<128x128xf32>
    %c4 = arith.constant 4 : index
    %c0_22 = arith.constant 0 : index
    %28 = vector.load %arg2[%c4, %c0_22] : memref<6x128xf32, #tpu.memory_space<vmem>>, vector<1x128xf32>
    %cst_23 = arith.constant dense<0.000000e+00> : vector<8x128xf32>
    %29 = tpu.matmul %26, %27, %cst_23 {dimension_numbers = #tpu.dot_dimension_numbers<[1], [0], [0], [1], [0, 0, 1, 1], [], []>} : vector<8x128xf32>, vector<128x128xf32>, vector<8x128xf32> -> vector<8x128xf32>
    %30 = vector.broadcast %28 : vector<1x128xf32> to vector<8x128xf32>
    %31 = arith.addf %29, %30 : vector<8x128xf32>
    %cst_24 = arith.constant 0.000000e+00 : f32
    %32 = vector.broadcast %cst_24 : f32 to vector<8x128xf32>
    %33 = arith.maximumf %31, %32 : vector<8x128xf32>
    %c0_25 = arith.constant 0 : index
    %c0_26 = arith.constant 0 : index
    %34 = vector.load %arg8[%c0_25, %c0_26] : memref<128x128xf32, #tpu.memory_space<vmem>>, vector<128x128xf32>
    %c5 = arith.constant 5 : index
    %c0_27 = arith.constant 0 : index
    %35 = vector.load %arg2[%c5, %c0_27] : memref<6x128xf32, #tpu.memory_space<vmem>>, vector<1x128xf32>
    %cst_28 = arith.constant dense<0.000000e+00> : vector<8x128xf32>
    %36 = tpu.matmul %33, %34, %cst_28 {dimension_numbers = #tpu.dot_dimension_numbers<[1], [0], [0], [1], [0, 0, 1, 1], [], []>} : vector<8x128xf32>, vector<128x128xf32>, vector<8x128xf32> -> vector<8x128xf32>
    %37 = vector.broadcast %35 : vector<1x128xf32> to vector<8x128xf32>
    %38 = arith.addf %36, %37 : vector<8x128xf32>
    %c0_29 = arith.constant 0 : index
    %c0_30 = arith.constant 0 : index
    %39 = vector.load %arg9[%c0_29, %c0_30] : memref<8x128xf32, #tpu.memory_space<vmem>>, vector<8x128xf32>
    tpu.vector_store %arg9[%c0_29, %c0_30], %38 {strides = array<i32>} : memref<8x128xf32, #tpu.memory_space<vmem>>, vector<8x128xf32>,
    return
  }
  func.func @transform_0(%arg0: i32) -> (i32, i32) {
    %c0_i32 = arith.constant 0 : i32
    %c0_i32_0 = arith.constant 0 : i32
    return %arg0, %c0_i32 : i32, i32
  }
  func.func @transform_1(%arg0: i32) -> (i32, i32) {
    %c0_i32 = arith.constant 0 : i32
    %c0_i32_0 = arith.constant 0 : i32
    %c0_i32_1 = arith.constant 0 : i32
    return %c0_i32, %c0_i32_0 : i32, i32
  }
  func.func @transform_2(%arg0: i32) -> (i32, i32) {
    %c0_i32 = arith.constant 0 : i32
    %c0_i32_0 = arith.constant 0 : i32
    %c0_i32_1 = arith.constant 0 : i32
    return %c0_i32, %c0_i32_0 : i32, i32
  }
  func.func @transform_3(%arg0: i32) -> (i32, i32) {
    %c0_i32 = arith.constant 0 : i32
    %c0_i32_0 = arith.constant 0 : i32
    %c0_i32_1 = arith.constant 0 : i32
    return %c0_i32, %c0_i32_0 : i32, i32
  }
  func.func @transform_4(%arg0: i32) -> (i32, i32) {
    %c0_i32 = arith.constant 0 : i32
    %c0_i32_0 = arith.constant 0 : i32
    %c0_i32_1 = arith.constant 0 : i32
    return %c0_i32, %c0_i32_0 : i32, i32
  }
  func.func @transform_5(%arg0: i32) -> (i32, i32) {
    %c0_i32 = arith.constant 0 : i32
    %c0_i32_0 = arith.constant 0 : i32
    %c0_i32_1 = arith.constant 0 : i32
    return %c0_i32, %c0_i32_0 : i32, i32
  }
  func.func @transform_6(%arg0: i32) -> (i32, i32) {
    %c0_i32 = arith.constant 0 : i32
    %c0_i32_0 = arith.constant 0 : i32
    %c0_i32_1 = arith.constant 0 : i32
    return %c0_i32, %c0_i32_0 : i32, i32
  }
  func.func @transform_7(%arg0: i32) -> (i32, i32) {
    %c0_i32 = arith.constant 0 : i32
    %c0_i32_0 = arith.constant 0 : i32
    %c0_i32_1 = arith.constant 0 : i32
    return %c0_i32, %c0_i32_0 : i32, i32
  }
  func.func @transform_8(%arg0: i32) -> (i32, i32) {
    %c0_i32 = arith.constant 0 : i32
    %c0_i32_0 = arith.constant 0 : i32
    return %arg0, %c0_i32 : i32, i32
  }
}

module attributes {stable_mosaic.version = 11 : i64} {
  func.func @_fused_mlp_kernel(%arg0: i32, %arg1: memref<8x128xf32, #tpu.memory_space<vmem>>, %arg2: memref<6x128xf32, #tpu.memory_space<vmem>>, %arg3: memref<128x128xf32, #tpu.memory_space<vmem>>, %arg4: memref<128x128xf32, #tpu.memory_space<vmem>>, %arg5: memref<128x128xf32, #tpu.memory_space<vmem>>, %arg6: memref<128x128xf32, #tpu.memory_space<vmem>>, %arg7: memref<128x128xf32, #tpu.memory_space<vmem>>, %arg8: memref<128x128xf32, #tpu.memory_space<vmem>>, %arg9: memref<8x128xf32, #tpu.memory_space<vmem>>) attributes {dimension_semantics = [#tpu.dimension_semantics<parallel>], iteration_bounds = array<i64: 1>, scalar_prefetch = 0 : i64, scratch_operands = 0 : i64, tpu.core_type = #tpu.core_type<tc>, window_params = [{transform_indices = @transform_0, window_bounds = array<i64: 8, 128>}, {pipeline_mode = #tpu.pipeline_mode<synchronous>, transform_indices = @transform_1, window_bounds = array<i64: 6, 128>}, {pipeline_mode = #tpu.pipeline_mode<synchronous>, transform_indices = @transform_2, window_bounds = array<i64: 128, 128>}, {pipeline_mode = #tpu.pipeline_mode<synchronous>, transform_indices = @transform_3, window_bounds = array<i64: 128, 128>}, {pipeline_mode = #tpu.pipeline_mode<synchronous>, transform_indices = @transform_4, window_bounds = array<i64: 128, 128>}, {pipeline_mode = #tpu.pipeline_mode<synchronous>, transform_indices = @transform_5, window_bounds = array<i64: 128, 128>}, {pipeline_mode = #tpu.pipeline_mode<synchronous>, transform_indices = @transform_6, window_bounds = array<i64: 128, 128>}, {pipeline_mode = #tpu.pipeline_mode<synchronous>, transform_indices = @transform_7, window_bounds = array<i64: 128, 128>}, {transform_indices = @transform_8, window_bounds = array<i64: 8, 128>}]} {
    %c0 = arith.constant 0 : index
    %c0_0 = arith.constant 0 : index
    %0 = vector.load %arg1[%c0, %c0_0] : memref<8x128xf32, #tpu.memory_space<vmem>>, vector<8x128xf32>
    %c0_1 = arith.constant 0 : index
    %c0_2 = arith.constant 0 : index
    %1 = vector.load %arg3[%c0_1, %c0_2] : memref<128x128xf32, #tpu.memory_space<vmem>>, vector<128x128xf32>
    %c0_3 = arith.constant 0 : index
    %c0_4 = arith.constant 0 : index
    %2 = vector.load %arg2[%c0_3, %c0_4] : memref<6x128xf32, #tpu.memory_space<vmem>>, vector<1x128xf32>
    %cst = arith.constant dense<0.000000e+00> : vector<8x128xf32>
    %3 = tpu.matmul %0, %1, %cst {dimension_numbers = #tpu.dot_dimension_numbers<[1], [0], [0], [1], [0, 0, 1, 1], [], []>} : vector<8x128xf32>, vector<128x128xf32>, vector<8x128xf32> -> vector<8x128xf32>
    %4 = vector.broadcast %2 : vector<1x128xf32> to vector<8x128xf32>
    %5 = arith.addf %3, %4 : vector<8x128xf32>
    %cst_5 = arith.constant 0.000000e+00 : f32
    %6 = vector.broadcast %cst_5 : f32 to vector<8x128xf32>
    %7 = arith.maximumf %5, %6 : vector<8x128xf32>
    %c0_6 = arith.constant 0 : index
    %c0_7 = arith.constant 0 : index
    %8 = vector.load %arg4[%c0_6, %c0_7] : memref<128x128xf32, #tpu.memory_space<vmem>>, vector<128x128xf32>
    %c1 = arith.constant 1 : index
    %c0_8 = arith.constant 0 : index
    %9 = vector.load %arg2[%c1, %c0_8] : memref<6x128xf32, #tpu.memory_space<vmem>>, vector<1x128xf32>
    %cst_9 = arith.constant dense<0.000000e+00> : vector<8x128xf32>
    %10 = tpu.matmul %7, %8, %cst_9 {dimension_numbers = #tpu.dot_dimension_numbers<[1], [0], [0], [1], [0, 0, 1, 1], [], []>} : vector<8x128xf32>, vector<128x128xf32>, vector<8x128xf32> -> vector<8x128xf32>
    %11 = vector.broadcast %9 : vector<1x128xf32> to vector<8x128xf32>
    %12 = arith.addf %10, %11 : vector<8x128xf32>
    %cst_10 = arith.constant 0.000000e+00 : f32
    %13 = vector.broadcast %cst_10 : f32 to vector<8x128xf32>
    %14 = arith.maximumf %12, %13 : vector<8x128xf32>
    %c0_11 = arith.constant 0 : index
    %c0_12 = arith.constant 0 : index
    %15 = vector.load %arg5[%c0_11, %c0_12] : memref<128x128xf32, #tpu.memory_space<vmem>>, vector<128x128xf32>
    %c2 = arith.constant 2 : index
    %c0_13 = arith.constant 0 : index
    %16 = vector.load %arg2[%c2, %c0_13] : memref<6x128xf32, #tpu.memory_space<vmem>>, vector<1x128xf32>
    %cst_14 = arith.constant dense<0.000000e+00> : vector<8x128xf32>
    %17 = tpu.matmul %14, %15, %cst_14 {dimension_numbers = #tpu.dot_dimension_numbers<[1], [0], [0], [1], [0, 0, 1, 1], [], []>} : vector<8x128xf32>, vector<128x128xf32>, vector<8x128xf32> -> vector<8x128xf32>
    %18 = vector.broadcast %16 : vector<1x128xf32> to vector<8x128xf32>
    %19 = arith.addf %17, %18 : vector<8x128xf32>
    %c0_15 = arith.constant 0 : index
    %c0_16 = arith.constant 0 : index
    %20 = vector.load %arg6[%c0_15, %c0_16] : memref<128x128xf32, #tpu.memory_space<vmem>>, vector<128x128xf32>
    %c3 = arith.constant 3 : index
    %c0_17 = arith.constant 0 : index
    %21 = vector.load %arg2[%c3, %c0_17] : memref<6x128xf32, #tpu.memory_space<vmem>>, vector<1x128xf32>
    %cst_18 = arith.constant dense<0.000000e+00> : vector<8x128xf32>
    %22 = tpu.matmul %19, %20, %cst_18 {dimension_numbers = #tpu.dot_dimension_numbers<[1], [0], [0], [1], [0, 0, 1, 1], [], []>} : vector<8x128xf32>, vector<128x128xf32>, vector<8x128xf32> -> vector<8x128xf32>
    %23 = vector.broadcast %21 : vector<1x128xf32> to vector<8x128xf32>
    %24 = arith.addf %22, %23 : vector<8x128xf32>
    %cst_19 = arith.constant 0.000000e+00 : f32
    %25 = vector.broadcast %cst_19 : f32 to vector<8x128xf32>
    %26 = arith.maximumf %24, %25 : vector<8x128xf32>
    %c0_20 = arith.constant 0 : index
    %c0_21 = arith.constant 0 : index
    %27 = vector.load %arg7[%c0_20, %c0_21] : memref<128x128xf32, #tpu.memory_space<vmem>>, vector<128x128xf32>
    %c4 = arith.constant 4 : index
    %c0_22 = arith.constant 0 : index
    %28 = vector.load %arg2[%c4, %c0_22] : memref<6x128xf32, #tpu.memory_space<vmem>>, vector<1x128xf32>
    %cst_23 = arith.constant dense<0.000000e+00> : vector<8x128xf32>
    %29 = tpu.matmul %26, %27, %cst_23 {dimension_numbers = #tpu.dot_dimension_numbers<[1], [0], [0], [1], [0, 0, 1, 1], [], []>} : vector<8x128xf32>, vector<128x128xf32>, vector<8x128xf32> -> vector<8x128xf32>
    %30 = vector.broadcast %28 : vector<1x128xf32> to vector<8x128xf32>
    %31 = arith.addf %29, %30 : vector<8x128xf32>
    %cst_24 = arith.constant 0.000000e+00 : f32
    %32 = vector.broadcast %cst_24 : f32 to vector<8x128xf32>
    %33 = arith.maximumf %31, %32 : vector<8x128xf32>
    %c0_25 = arith.constant 0 : index
    %c0_26 = arith.constant 0 : index
    %34 = vector.load %arg8[%c0_25, %c0_26] : memref<128x128xf32, #tpu.memory_space<vmem>>, vector<128x128xf32>
    %c5 = arith.constant 5 : index
    %c0_27 = arith.constant 0 : index
    %35 = vector.load %arg2[%c5, %c0_27] : memref<6x128xf32, #tpu.memory_space<vmem>>, vector<1x128xf32>
    %cst_28 = arith.constant dense<0.000000e+00> : vector<8x128xf32>
    %36 = tpu.matmul %33, %34, %cst_28 {dimension_numbers = #tpu.dot_dimension_numbers<[1], [0], [0], [1], [0, 0, 1, 1], [], []>} : vector<8x128xf32>, vector<128x128xf32>, vector<8x128xf32> -> vector<8x128xf32>
    %37 = vector.broadcast %35 : vector<1x128xf32> to vector<8x128xf32>
    %38 = arith.addf %36, %37 : vector<8x128xf32>
    %c0_29 = arith.constant 0 : index
    %c0_30 = arith.constant 0 : index
    %39 = vector.load %arg9[%c0_29, %c0_30] : memref<8x128xf32, #tpu.memory_space<vmem>>, vector<8x128xf32>
    tpu.vector_store %arg9[%c0_29, %c0_30], %38 {strides = array<i32>} : memref<8x128xf32, #tpu.memory_space<vmem>>, vector<8x128xf32>,
    return
  }
  func.func @transform_0(%arg0: i32) -> (i32, i32) {
    %c0_i32 = arith.constant 0 : i32
    %c0_i32_0 = arith.constant 0 : i32
    return %arg0, %c0_i32 : i32, i32
  }
  func.func @transform_1(%arg0: i32) -> (i32, i32) {
    %c0_i32 = arith.constant 0 : i32
    %c0_i32_0 = arith.constant 0 : i32
    %c0_i32_1 = arith.constant 0 : i32
    return %c0_i32, %c0_i32_0 : i32, i32
  }
  func.func @transform_2(%arg0: i32) -> (i32, i32) {
    %c0_i32 = arith.constant 0 : i32
    %c0_i32_0 = arith.constant 0 : i32
    %c0_i32_1 = arith.constant 0 : i32
    return %c0_i32, %c0_i32_0 : i32, i32
  }
  func.func @transform_3(%arg0: i32) -> (i32, i32) {
    %c0_i32 = arith.constant 0 : i32
    %c0_i32_0 = arith.constant 0 : i32
    %c0_i32_1 = arith.constant 0 : i32
    return %c0_i32, %c0_i32_0 : i32, i32
  }
  func.func @transform_4(%arg0: i32) -> (i32, i32) {
    %c0_i32 = arith.constant 0 : i32
    %c0_i32_0 = arith.constant 0 : i32
    %c0_i32_1 = arith.constant 0 : i32
    return %c0_i32, %c0_i32_0 : i32, i32
  }
  func.func @transform_5(%arg0: i32) -> (i32, i32) {
    %c0_i32 = arith.constant 0 : i32
    %c0_i32_0 = arith.constant 0 : i32
    %c0_i32_1 = arith.constant 0 : i32
    return %c0_i32, %c0_i32_0 : i32, i32
  }
  func.func @transform_6(%arg0: i32) -> (i32, i32) {
    %c0_i32 = arith.constant 0 : i32
    %c0_i32_0 = arith.constant 0 : i32
    %c0_i32_1 = arith.constant 0 : i32
    return %c0_i32, %c0_i32_0 : i32, i32
  }
  func.func @transform_7(%arg0: i32) -> (i32, i32) {
    %c0_i32 = arith.constant 0 : i32
    %c0_i32_0 = arith.constant 0 : i32
    %c0_i32_1 = arith.constant 0 : i32
    return %c0_i32, %c0_i32_0 : i32, i32
  }
  func.func @transform_8(%arg0: i32) -> (i32, i32) {
    %c0_i32 = arith.constant 0 : i32
    %c0_i32_0 = arith.constant 0 : i32
    return %arg0, %c0_i32 : i32, i32
  }
}

</mosaic_0001>

<llo_original>
// kernel: tpu_custom_call.1
$region0: #{tpu_custom_call.1}
  #allocation0 [shape = 'u32[]', space=smem, size = 0x4, offset = 0x4, fixed_abs, tag = 'smem constant byte address 0x4 - core index']
  #allocation1 [shape = 'u32[144,128]{1,0:T(1,128)}', space=vmem, size = 0x12000, scoped, tag = 'internal scratch']
  %s0 = inlined_call_operand.hbm [shape: f32[8,128], index: 0, kind: input, shape index: {}]
  %s1 = inlined_call_operand.hbm [shape: f32[6,128], index: 1, kind: input, shape index: {}]
  %s2 = inlined_call_operand.hbm [shape: f32[128,128], index: 2, kind: input, shape index: {}]
  %s3 = inlined_call_operand.hbm [shape: f32[128,128], index: 3, kind: input, shape index: {}]
  %s4 = inlined_call_operand.hbm [shape: f32[128,128], index: 4, kind: input, shape index: {}]
  %s5 = inlined_call_operand.hbm [shape: f32[128,128], index: 5, kind: input, shape index: {}]
  %s6 = inlined_call_operand.hbm [shape: f32[128,128], index: 6, kind: input, shape index: {}]
  %s7 = inlined_call_operand.hbm [shape: f32[128,128], index: 7, kind: input, shape index: {}]
  %s8 = inlined_call_operand.hbm [shape: f32[8,128], index: 8, kind: output, shape index: {}]
  %s9 = sld [smem:[#allocation0]]
  $region74: #{tpu_custom_call.1} parent=0
    _
  %s11 = ssub.s32 1, %s9
  %s12 = scalar_select 0, %s11, %s9
  $region1: #{tpu_custom_call.1} parent=0
    #allocation2 [shape = 'u8[4096]{0}', space=vmem, size = 0x1000, scoped, tag = 'input window, operand 0, single buffered']
    #allocation3 [shape = 's32[1]{0}', space=sflag, size = 0x4, scoped, tag = 'scoped memory for tpu_custom_call.1']
    #allocation4 [shape = 's32[1]{0}', space=sflag, size = 0x4, scoped, tag = 'scoped memory for tpu_custom_call.1']
    #allocation5 [shape = 'u8[4096]{0}', space=vmem, size = 0x1000, scoped, tag = 'input window, operand 1, single buffered']
    #allocation6 [shape = 's32[1]{0}', space=sflag, size = 0x4, scoped, tag = 'scoped memory for tpu_custom_call.1']
    #allocation7 [shape = 'u8[65536]{0}', space=vmem, size = 0x10000, scoped, tag = 'input window, operand 2, single buffered']
    #allocation8 [shape = 'u8[65536]{0}', space=vmem, size = 0x10000, scoped, tag = 'input window, operand 3, single buffered']
    #allocation9 [shape = 's32[1]{0}', space=sflag, size = 0x4, scoped, tag = 'scoped memory for tpu_custom_call.1']
    #allocation10 [shape = 'u8[65536]{0}', space=vmem, size = 0x10000, scoped, tag = 'input window, operand 4, single buffered']
    #allocation11 [shape = 'u8[65536]{0}', space=vmem, size = 0x10000, scoped, tag = 'input window, operand 5, single buffered']
    #allocation12 [shape = 's32[1]{0}', space=sflag, size = 0x4, scoped, tag = 'scoped memory for tpu_custom_call.1']
    #allocation13 [shape = 'u8[65536]{0}', space=vmem, size = 0x10000, scoped, tag = 'input window, operand 6, single buffered']
    #allocation14 [shape = 'u8[65536]{0}', space=vmem, size = 0x10000, scoped, tag = 'input window, operand 7, single buffered']
    #allocation15 [shape = 's32[1]{0}', space=sflag, size = 0x4, scoped, tag = 'scoped memory for tpu_custom_call.1']
    #allocation16 [shape = 'u8[4096]{0}', space=vmem, size = 0x1000, scoped, tag = 'output window, operand 0, single buffered']
    %13 = vsyncpa [#allocation3], 0
    %14 = vsyncpa [#allocation6], 0
    %15 = vsyncpa [#allocation9], 0
    %16 = vsyncpa [#allocation12], 0
    %17 = vsyncpa [#allocation15], 0
    %18 = vsyncpa [#allocation4], 0
    // Predicated region
    $region2: #{tpu_custom_call.1} parent=1 // pred_check
      _
    $region3: #{tpu_custom_call.1} parent=1 // pred_check_branch
      %20 = sbr.rel (0) target = $region5
    $region4: #{tpu_custom_call.1} parent=1 // pred_region
      %s22 = ssub.s32 128, 128
      %23 = vsyncadd [#allocation3], %s22
      %s25 = sshll.u32 [#allocation2], 4
      %s26 = int_to_ptr.vmem [resolvable:$true] %s25
      %28 = dma.hbm_to_vmem [thread:$0]  %s0, 128, %s26, [#allocation3]
    $region5: #{tpu_custom_call.1} parent=1 // pred_fallthru
      _
    // Predicated region
    $region6: #{tpu_custom_call.1} parent=1 // pred_check
      _
    $region7: #{tpu_custom_call.1} parent=1 // pred_check_branch
      %30 = sbr.rel (0) target = $region9
    $region8: #{tpu_custom_call.1} parent=1 // pred_region
      %s32 = ssub.s32 128, 128
      %33 = vsyncadd [#allocation6], %s32
      %s35 = sshll.u32 [#allocation5], 4
      %s36 = int_to_ptr.vmem [resolvable:$true] %s35
      %38 = dma.hbm_to_vmem [thread:$0]  %s1, 128, %s36, [#allocation6]
    $region9: #{tpu_custom_call.1} parent=1 // pred_fallthru
      _
    // Predicated region
    $region10: #{tpu_custom_call.1} parent=1 // pred_check
      _
    $region11: #{tpu_custom_call.1} parent=1 // pred_check_branch
      %40 = sbr.rel (0) target = $region13
    $region12: #{tpu_custom_call.1} parent=1 // pred_region
      %s42 = ssub.s32 2048, 2048
      %43 = vsyncadd [#allocation6], %s42
      %s44 = sshll.u32 [#allocation7], 4
      %s45 = int_to_ptr.vmem [resolvable:$true] %s44
      %50 = dma.hbm_to_vmem [thread:$0]  %s2, 2048, %s45, [#allocation6], 128, 128, 8
    $region13: #{tpu_custom_call.1} parent=1 // pred_fallthru
      _
    // Predicated region
    $region14: #{tpu_custom_call.1} parent=1 // pred_check
      _
    $region15: #{tpu_custom_call.1} parent=1 // pred_check_branch
      %52 = sbr.rel (0) target = $region17
    $region16: #{tpu_custom_call.1} parent=1 // pred_region
      %s54 = ssub.s32 2048, 2048
      %55 = vsyncadd [#allocation9], %s54
      %s56 = sshll.u32 [#allocation8], 4
      %s57 = int_to_ptr.vmem [resolvable:$true] %s56
      %62 = dma.hbm_to_vmem [thread:$0]  %s3, 2048, %s57, [#allocation9], 128, 128, 8
    $region17: #{tpu_custom_call.1} parent=1 // pred_fallthru
      _
    // Predicated region
    $region18: #{tpu_custom_call.1} parent=1 // pred_check
      _
    $region19: #{tpu_custom_call.1} parent=1 // pred_check_branch
      %64 = sbr.rel (0) target = $region21
    $region20: #{tpu_custom_call.1} parent=1 // pred_region
      %s66 = ssub.s32 2048, 2048
      %67 = vsyncadd [#allocation9], %s66
      %s68 = sshll.u32 [#allocation10], 4
      %s69 = int_to_ptr.vmem [resolvable:$true] %s68
      %74 = dma.hbm_to_vmem [thread:$0]  %s4, 2048, %s69, [#allocation9], 128, 128, 8
    $region21: #{tpu_custom_call.1} parent=1 // pred_fallthru
      _
    // Predicated region
    $region22: #{tpu_custom_call.1} parent=1 // pred_check
      _
    $region23: #{tpu_custom_call.1} parent=1 // pred_check_branch
      %76 = sbr.rel (0) target = $region25
    $region24: #{tpu_custom_call.1} parent=1 // pred_region
      %s78 = ssub.s32 2048, 2048
      %79 = vsyncadd [#allocation12], %s78
      %s80 = sshll.u32 [#allocation11], 4
      %s81 = int_to_ptr.vmem [resolvable:$true] %s80
      %86 = dma.hbm_to_vmem [thread:$0]  %s5, 2048, %s81, [#allocation12], 128, 128, 8
    $region25: #{tpu_custom_call.1} parent=1 // pred_fallthru
      _
    // Predicated region
    $region26: #{tpu_custom_call.1} parent=1 // pred_check
      _
    $region27: #{tpu_custom_call.1} parent=1 // pred_check_branch
      %88 = sbr.rel (0) target = $region29
    $region28: #{tpu_custom_call.1} parent=1 // pred_region
      %s90 = ssub.s32 2048, 2048
      %91 = vsyncadd [#allocation12], %s90
      %s92 = sshll.u32 [#allocation13], 4
      %s93 = int_to_ptr.vmem [resolvable:$true] %s92
      %98 = dma.hbm_to_vmem [thread:$0]  %s6, 2048, %s93, [#allocation12], 128, 128, 8
    $region29: #{tpu_custom_call.1} parent=1 // pred_fallthru
      _
    // Predicated region
    $region30: #{tpu_custom_call.1} parent=1 // pred_check
      _
    $region31: #{tpu_custom_call.1} parent=1 // pred_check_branch
      %100 = sbr.rel (0) target = $region33
    $region32: #{tpu_custom_call.1} parent=1 // pred_region
      %s102 = ssub.s32 2048, 2048
      %103 = vsyncadd [#allocation15], %s102
      %s104 = sshll.u32 [#allocation14], 4
      %s105 = int_to_ptr.vmem [resolvable:$true] %s104
      %110 = dma.hbm_to_vmem [thread:$0]  %s7, 2048, %s105, [#allocation15], 128, 128, 8
    $region33: #{tpu_custom_call.1} parent=1 // pred_fallthru
      _
    // Predicated region
    $region34: #{tpu_custom_call.1} parent=1 // pred_check
      _
    $region35: #{tpu_custom_call.1} parent=1 // pred_check_branch
      %112 = sbr.rel (0) target = $region37
    $region36: #{tpu_custom_call.1} parent=1 // pred_region
      %113 = dma.done [#allocation3], 128
    $region37: #{tpu_custom_call.1} parent=1 // pred_fallthru
      _
    // Predicated region
    $region38: #{tpu_custom_call.1} parent=1 // pred_check
      _
    $region39: #{tpu_custom_call.1} parent=1 // pred_check_branch
      %115 = sbr.rel (0) target = $region41
    $region40: #{tpu_custom_call.1} parent=1 // pred_region
      %116 = dma.done [#allocation6], 128
    $region41: #{tpu_custom_call.1} parent=1 // pred_fallthru
      _
    // Predicated region
    $region42: #{tpu_custom_call.1} parent=1 // pred_check
      _
    $region43: #{tpu_custom_call.1} parent=1 // pred_check_branch
      %118 = sbr.rel (0) target = $region45
    $region44: #{tpu_custom_call.1} parent=1 // pred_region
      %119 = dma.done [#allocation6], 2048
    $region45: #{tpu_custom_call.1} parent=1 // pred_fallthru
      _
    // Predicated region
    $region46: #{tpu_custom_call.1} parent=1 // pred_check
      _
    $region47: #{tpu_custom_call.1} parent=1 // pred_check_branch
      %121 = sbr.rel (0) target = $region49
    $region48: #{tpu_custom_call.1} parent=1 // pred_region
      %122 = dma.done [#allocation9], 2048
    $region49: #{tpu_custom_call.1} parent=1 // pred_fallthru
      _
    // Predicated region
    $region50: #{tpu_custom_call.1} parent=1 // pred_check
      _
    $region51: #{tpu_custom_call.1} parent=1 // pred_check_branch
      %124 = sbr.rel (0) target = $region53
    $region52: #{tpu_custom_call.1} parent=1 // pred_region
      %125 = dma.done [#allocation9], 2048
    $region53: #{tpu_custom_call.1} parent=1 // pred_fallthru
      _
    // Predicated region
    $region54: #{tpu_custom_call.1} parent=1 // pred_check
      _
    $region55: #{tpu_custom_call.1} parent=1 // pred_check_branch
      %127 = sbr.rel (0) target = $region57
    $region56: #{tpu_custom_call.1} parent=1 // pred_region
      %128 = dma.done [#allocation12], 2048
    $region57: #{tpu_custom_call.1} parent=1 // pred_fallthru
      _
    // Predicated region
    $region58: #{tpu_custom_call.1} parent=1 // pred_check
      _
    $region59: #{tpu_custom_call.1} parent=1 // pred_check_branch
      %130 = sbr.rel (0) target = $region61
    $region60: #{tpu_custom_call.1} parent=1 // pred_region
      %131 = dma.done [#allocation12], 2048
    $region61: #{tpu_custom_call.1} parent=1 // pred_fallthru
      _
    // Predicated region
    $region62: #{tpu_custom_call.1} parent=1 // pred_check
      _
    $region63: #{tpu_custom_call.1} parent=1 // pred_check_branch
      %133 = sbr.rel (0) target = $region65
    $region64: #{tpu_custom_call.1} parent=1 // pred_region
      %134 = dma.done [#allocation15], 2048
    $region65: #{tpu_custom_call.1} parent=1 // pred_fallthru
      _
    %v135 = vld [vmem:[#allocation2] sm:$0xff]
    %v136 = vld [vmem:[#allocation7] sm:$0xff]
    %v137 = vld [vmem:[#allocation7 + $0x8] sm:$0xff]
    %v138 = vld [vmem:[#allocation7 + $0x10] sm:$0xff]
    %v139 = vld [vmem:[#allocation7 + $0x18] sm:$0xff]
    %v140 = vld [vmem:[#allocation7 + $0x20] sm:$0xff]
    %v141 = vld [vmem:[#allocation7 + $0x28] sm:$0xff]
    %v142 = vld [vmem:[#allocation7 + $0x30] sm:$0xff]
    %v143 = vld [vmem:[#allocation7 + $0x38] sm:$0xff]
    %v144 = vld [vmem:[#allocation7 + $0x40] sm:$0xff]
    %v145 = vld [vmem:[#allocation7 + $0x48] sm:$0xff]
    %v146 = vld [vmem:[#allocation7 + $0x50] sm:$0xff]
    %v147 = vld [vmem:[#allocation7 + $0x58] sm:$0xff]
    %v148 = vld [vmem:[#allocation7 + $0x60] sm:$0xff]
    %v149 = vld [vmem:[#allocation7 + $0x68] sm:$0xff]
    %v150 = vld [vmem:[#allocation7 + $0x70] sm:$0xff]
    %v151 = vld [vmem:[#allocation7 + $0x78] sm:$0xff]
    %v152 = vld [vmem:[#allocation5] sm:$0x1]
    %v153 = vlaneseq
    %v154 = vshrl.u32 %v153, 7
    %v155 = vsub.s32 0, %v154
    %v156 = vrot.slane %v152, %v155
    %157 = vmatprep.subr.mxu0 0.0
    %158 = vmatpush1.msra.mxu0 %v151
    %159 = vmatprep.subr.mxu0 0.0
    %160 = vmatpush1.msra.mxu0 %v150
    %161 = vmatprep.subr.mxu0 0.0
    %162 = vmatpush1.msra.mxu0 %v149
    %163 = vmatprep.subr.mxu0 0.0
    %164 = vmatpush1.msra.mxu0 %v148
    %165 = vmatprep.subr.mxu0 0.0
    %166 = vmatpush1.msra.mxu0 %v147
    %167 = vmatprep.subr.mxu0 0.0
    %168 = vmatpush1.msra.mxu0 %v146
    %169 = vmatprep.subr.mxu0 0.0
    %170 = vmatpush1.msra.mxu0 %v145
    %171 = vmatprep.subr.mxu0 0.0
    %172 = vmatpush1.msra.mxu0 %v144
    %173 = vmatprep.subr.mxu0 0.0
    %174 = vmatpush1.msra.mxu0 %v143
    %175 = vmatprep.subr.mxu0 0.0
    %176 = vmatpush1.msra.mxu0 %v142
    %177 = vmatprep.subr.mxu0 0.0
    %178 = vmatpush1.msra.mxu0 %v141
    %179 = vmatprep.subr.mxu0 0.0
    %180 = vmatpush1.msra.mxu0 %v140
    %181 = vmatprep.subr.mxu0 0.0
    %182 = vmatpush1.msra.mxu0 %v139
    %183 = vmatprep.subr.mxu0 0.0
    %184 = vmatpush1.msra.mxu0 %v138
    %185 = vmatprep.subr.mxu0 0.0
    %186 = vmatpush1.msra.mxu0 %v137
    %187 = vmatprep.subr.mxu0 0.0
    %188 = vmatpush1.msra.mxu0 %v136
    %189 = vmatprep.subr.mxu0 0.0
    %190 = vmatpush2.msra.mxu0 0.0
    %191 = vmatprep.subr.mxu0 0.0
    %192 = vmatpush2.msra.mxu0 0.0
    %193 = vmatprep.subr.mxu0 0.0
    %194 = vmatpush2.msra.mxu0 0.0
    %195 = vmatprep.subr.mxu0 0.0
    %196 = vmatpush2.msra.mxu0 0.0
    %197 = vmatprep.subr.mxu0 0.0
    %198 = vmatpush2.msra.mxu0 0.0
    %199 = vmatprep.subr.mxu0 0.0
    %200 = vmatpush2.msra.mxu0 0.0
    %201 = vmatprep.subr.mxu0 0.0
    %202 = vmatpush2.msra.mxu0 0.0
    %203 = vmatprep.subr.mxu0 0.0
    %204 = vmatpush2.msra.mxu0 0.0
    %205 = vmatprep.subr.mxu0 0.0
    %206 = vmatpush2.msra.mxu0 0.0
    %207 = vmatprep.subr.mxu0 0.0
    %208 = vmatpush2.msra.mxu0 0.0
    %209 = vmatprep.subr.mxu0 0.0
    %210 = vmatpush2.msra.mxu0 0.0
    %211 = vmatprep.subr.mxu0 0.0
    %212 = vmatpush2.msra.mxu0 0.0
    %213 = vmatprep.subr.mxu0 0.0
    %214 = vmatpush2.msra.mxu0 0.0
    %215 = vmatprep.subr.mxu0 0.0
    %216 = vmatpush2.msra.mxu0 0.0
    %217 = vmatprep.subr.mxu0 0.0
    %218 = vmatpush2.msra.mxu0 0.0
    %219 = vmatprep.subr.mxu0 0.0
    %220 = vmatpush2.msra.mxu0 0.0
    %221 = vmatprep.mubr.f32.mxu0 0.0
    %222 = vmatmul.mubr.f32.gmra.mxu0 %v135
    %v223 = vpop.f32.mrf.mxu0
    %v224 = vadd.f32 %v156, %v223
    %v225 = vpop.f32.mrf.mxu0
    %226 = vdwg.mxu0
    %v227 = vmax.f32 %v224, 0.0
    %v228 = vld [vmem:[#allocation8] sm:$0xff]
    %v229 = vld [vmem:[#allocation8 + $0x8] sm:$0xff]
    %v230 = vld [vmem:[#allocation8 + $0x10] sm:$0xff]
    %v231 = vld [vmem:[#allocation8 + $0x18] sm:$0xff]
    %v232 = vld [vmem:[#allocation8 + $0x20] sm:$0xff]
    %v233 = vld [vmem:[#allocation8 + $0x28] sm:$0xff]
    %v234 = vld [vmem:[#allocation8 + $0x30] sm:$0xff]
    %v235 = vld [vmem:[#allocation8 + $0x38] sm:$0xff]
    %v236 = vld [vmem:[#allocation8 + $0x40] sm:$0xff]
    %v237 = vld [vmem:[#allocation8 + $0x48] sm:$0xff]
    %v238 = vld [vmem:[#allocation8 + $0x50] sm:$0xff]
    %v239 = vld [vmem:[#allocation8 + $0x58] sm:$0xff]
    %v240 = vld [vmem:[#allocation8 + $0x60] sm:$0xff]
    %v241 = vld [vmem:[#allocation8 + $0x68] sm:$0xff]
    %v242 = vld [vmem:[#allocation8 + $0x70] sm:$0xff]
    %v243 = vld [vmem:[#allocation8 + $0x78] sm:$0xff]
    %v244 = vld [vmem:[#allocation5 + $0x1] sm:$0x1]
    %v245 = vlaneseq
    %v246 = vshrl.u32 %v245, 7
    %v247 = vsub.s32 0, %v246
    %v248 = vrot.slane %v244, %v247
    %249 = vmatprep.subr.mxu0 0.0
    %250 = vmatpush1.msra.mxu0 %v243
    %251 = vmatprep.subr.mxu0 0.0
    %252 = vmatpush1.msra.mxu0 %v242
    %253 = vmatprep.subr.mxu0 0.0
    %254 = vmatpush1.msra.mxu0 %v241
    %255 = vmatprep.subr.mxu0 0.0
    %256 = vmatpush1.msra.mxu0 %v240
    %257 = vmatprep.subr.mxu0 0.0
    %258 = vmatpush1.msra.mxu0 %v239
    %259 = vmatprep.subr.mxu0 0.0
    %260 = vmatpush1.msra.mxu0 %v238
    %261 = vmatprep.subr.mxu0 0.0
    %262 = vmatpush1.msra.mxu0 %v237
    %263 = vmatprep.subr.mxu0 0.0
    %264 = vmatpush1.msra.mxu0 %v236
    %265 = vmatprep.subr.mxu0 0.0
    %266 = vmatpush1.msra.mxu0 %v235
    %267 = vmatprep.subr.mxu0 0.0
    %268 = vmatpush1.msra.mxu0 %v234
    %269 = vmatprep.subr.mxu0 0.0
    %270 = vmatpush1.msra.mxu0 %v233
    %271 = vmatprep.subr.mxu0 0.0
    %272 = vmatpush1.msra.mxu0 %v232
    %273 = vmatprep.subr.mxu0 0.0
    %274 = vmatpush1.msra.mxu0 %v231
    %275 = vmatprep.subr.mxu0 0.0
    %276 = vmatpush1.msra.mxu0 %v230
    %277 = vmatprep.subr.mxu0 0.0
    %278 = vmatpush1.msra.mxu0 %v229
    %279 = vmatprep.subr.mxu0 0.0
    %280 = vmatpush1.msra.mxu0 %v228
    %281 = vmatprep.subr.mxu0 0.0
    %282 = vmatpush2.msra.mxu0 0.0
    %283 = vmatprep.subr.mxu0 0.0
    %284 = vmatpush2.msra.mxu0 0.0
    %285 = vmatprep.subr.mxu0 0.0
    %286 = vmatpush2.msra.mxu0 0.0
    %287 = vmatprep.subr.mxu0 0.0
    %288 = vmatpush2.msra.mxu0 0.0
    %289 = vmatprep.subr.mxu0 0.0
    %290 = vmatpush2.msra.mxu0 0.0
    %291 = vmatprep.subr.mxu0 0.0
    %292 = vmatpush2.msra.mxu0 0.0
    %293 = vmatprep.subr.mxu0 0.0
    %294 = vmatpush2.msra.mxu0 0.0
    %295 = vmatprep.subr.mxu0 0.0
    %296 = vmatpush2.msra.mxu0 0.0
    %297 = vmatprep.subr.mxu0 0.0
    %298 = vmatpush2.msra.mxu0 0.0
    %299 = vmatprep.subr.mxu0 0.0
    %300 = vmatpush2.msra.mxu0 0.0
    %301 = vmatprep.subr.mxu0 0.0
    %302 = vmatpush2.msra.mxu0 0.0
    %303 = vmatprep.subr.mxu0 0.0
    %304 = vmatpush2.msra.mxu0 0.0
    %305 = vmatprep.subr.mxu0 0.0
    %306 = vmatpush2.msra.mxu0 0.0
    %307 = vmatprep.subr.mxu0 0.0
    %308 = vmatpush2.msra.mxu0 0.0
    %309 = vmatprep.subr.mxu0 0.0
    %310 = vmatpush2.msra.mxu0 0.0
    %311 = vmatprep.subr.mxu0 0.0
    %312 = vmatpush2.msra.mxu0 0.0
    %313 = vmatprep.mubr.f32.mxu0 0.0
    %314 = vmatmul.mubr.f32.gmra.mxu0 %v227
    %v315 = vpop.f32.mrf.mxu0
    %v316 = vadd.f32 %v248, %v315
    %v317 = vpop.f32.mrf.mxu0
    %318 = vdwg.mxu0
    %v319 = vmax.f32 %v316, 0.0
    %v320 = vld [vmem:[#allocation10] sm:$0xff]
    %v321 = vld [vmem:[#allocation10 + $0x8] sm:$0xff]
    %v322 = vld [vmem:[#allocation10 + $0x10] sm:$0xff]
    %v323 = vld [vmem:[#allocation10 + $0x18] sm:$0xff]
    %v324 = vld [vmem:[#allocation10 + $0x20] sm:$0xff]
    %v325 = vld [vmem:[#allocation10 + $0x28] sm:$0xff]
    %v326 = vld [vmem:[#allocation10 + $0x30] sm:$0xff]
    %v327 = vld [vmem:[#allocation10 + $0x38] sm:$0xff]
    %v328 = vld [vmem:[#allocation10 + $0x40] sm:$0xff]
    %v329 = vld [vmem:[#allocation10 + $0x48] sm:$0xff]
    %v330 = vld [vmem:[#allocation10 + $0x50] sm:$0xff]
    %v331 = vld [vmem:[#allocation10 + $0x58] sm:$0xff]
    %v332 = vld [vmem:[#allocation10 + $0x60] sm:$0xff]
    %v333 = vld [vmem:[#allocation10 + $0x68] sm:$0xff]
    %v334 = vld [vmem:[#allocation10 + $0x70] sm:$0xff]
    %v335 = vld [vmem:[#allocation10 + $0x78] sm:$0xff]
    %v336 = vld [vmem:[#allocation5 + $0x2] sm:$0x1]
    %v337 = vlaneseq
    %v338 = vshrl.u32 %v337, 7
    %v339 = vsub.s32 0, %v338
    %v340 = vrot.slane %v336, %v339
    %341 = vmatprep.subr.mxu0 0.0
    %342 = vmatpush1.msra.mxu0 %v335
    %343 = vmatprep.subr.mxu0 0.0
    %344 = vmatpush1.msra.mxu0 %v334
    %345 = vmatprep.subr.mxu0 0.0
    %346 = vmatpush1.msra.mxu0 %v333
    %347 = vmatprep.subr.mxu0 0.0
    %348 = vmatpush1.msra.mxu0 %v332
    %349 = vmatprep.subr.mxu0 0.0
    %350 = vmatpush1.msra.mxu0 %v331
    %351 = vmatprep.subr.mxu0 0.0
    %352 = vmatpush1.msra.mxu0 %v330
    %353 = vmatprep.subr.mxu0 0.0
    %354 = vmatpush1.msra.mxu0 %v329
    %355 = vmatprep.subr.mxu0 0.0
    %356 = vmatpush1.msra.mxu0 %v328
    %357 = vmatprep.subr.mxu0 0.0
    %358 = vmatpush1.msra.mxu0 %v327
    %359 = vmatprep.subr.mxu0 0.0
    %360 = vmatpush1.msra.mxu0 %v326
    %361 = vmatprep.subr.mxu0 0.0
    %362 = vmatpush1.msra.mxu0 %v325
    %363 = vmatprep.subr.mxu0 0.0
    %364 = vmatpush1.msra.mxu0 %v324
    %365 = vmatprep.subr.mxu0 0.0
    %366 = vmatpush1.msra.mxu0 %v323
    %367 = vmatprep.subr.mxu0 0.0
    %368 = vmatpush1.msra.mxu0 %v322
    %369 = vmatprep.subr.mxu0 0.0
    %370 = vmatpush1.msra.mxu0 %v321
    %371 = vmatprep.subr.mxu0 0.0
    %372 = vmatpush1.msra.mxu0 %v320
    %373 = vmatprep.subr.mxu0 0.0
    %374 = vmatpush2.msra.mxu0 0.0
    %375 = vmatprep.subr.mxu0 0.0
    %376 = vmatpush2.msra.mxu0 0.0
    %377 = vmatprep.subr.mxu0 0.0
    %378 = vmatpush2.msra.mxu0 0.0
    %379 = vmatprep.subr.mxu0 0.0
    %380 = vmatpush2.msra.mxu0 0.0
    %381 = vmatprep.subr.mxu0 0.0
    %382 = vmatpush2.msra.mxu0 0.0
    %383 = vmatprep.subr.mxu0 0.0
    %384 = vmatpush2.msra.mxu0 0.0
    %385 = vmatprep.subr.mxu0 0.0
    %386 = vmatpush2.msra.mxu0 0.0
    %387 = vmatprep.subr.mxu0 0.0
    %388 = vmatpush2.msra.mxu0 0.0
    %389 = vmatprep.subr.mxu0 0.0
    %390 = vmatpush2.msra.mxu0 0.0
    %391 = vmatprep.subr.mxu0 0.0
    %392 = vmatpush2.msra.mxu0 0.0
    %393 = vmatprep.subr.mxu0 0.0
    %394 = vmatpush2.msra.mxu0 0.0
    %395 = vmatprep.subr.mxu0 0.0
    %396 = vmatpush2.msra.mxu0 0.0
    %397 = vmatprep.subr.mxu0 0.0
    %398 = vmatpush2.msra.mxu0 0.0
    %399 = vmatprep.subr.mxu0 0.0
    %400 = vmatpush2.msra.mxu0 0.0
    %401 = vmatprep.subr.mxu0 0.0
    %402 = vmatpush2.msra.mxu0 0.0
    %403 = vmatprep.subr.mxu0 0.0
    %404 = vmatpush2.msra.mxu0 0.0
    %405 = vmatprep.mubr.f32.mxu0 0.0
    %406 = vmatmul.mubr.f32.gmra.mxu0 %v319
    %v407 = vpop.f32.mrf.mxu0
    %v408 = vadd.f32 %v340, %v407
    %v409 = vpop.f32.mrf.mxu0
    %410 = vdwg.mxu0
    %v411 = vld [vmem:[#allocation11] sm:$0xff]
    %v412 = vld [vmem:[#allocation11 + $0x8] sm:$0xff]
    %v413 = vld [vmem:[#allocation11 + $0x10] sm:$0xff]
    %v414 = vld [vmem:[#allocation11 + $0x18] sm:$0xff]
    %v415 = vld [vmem:[#allocation11 + $0x20] sm:$0xff]
    %v416 = vld [vmem:[#allocation11 + $0x28] sm:$0xff]
    %v417 = vld [vmem:[#allocation11 + $0x30] sm:$0xff]
    %v418 = vld [vmem:[#allocation11 + $0x38] sm:$0xff]
    %v419 = vld [vmem:[#allocation11 + $0x40] sm:$0xff]
    %v420 = vld [vmem:[#allocation11 + $0x48] sm:$0xff]
    %v421 = vld [vmem:[#allocation11 + $0x50] sm:$0xff]
    %v422 = vld [vmem:[#allocation11 + $0x58] sm:$0xff]
    %v423 = vld [vmem:[#allocation11 + $0x60] sm:$0xff]
    %v424 = vld [vmem:[#allocation11 + $0x68] sm:$0xff]
    %v425 = vld [vmem:[#allocation11 + $0x70] sm:$0xff]
    %v426 = vld [vmem:[#allocation11 + $0x78] sm:$0xff]
    %v427 = vld [vmem:[#allocation5 + $0x3] sm:$0x1]
    %v428 = vlaneseq
    %v429 = vshrl.u32 %v428, 7
    %v430 = vsub.s32 0, %v429
    %v431 = vrot.slane %v427, %v430
    %432 = vmatprep.subr.mxu0 0.0
    %433 = vmatpush1.msra.mxu0 %v426
    %434 = vmatprep.subr.mxu0 0.0
    %435 = vmatpush1.msra.mxu0 %v425
    %436 = vmatprep.subr.mxu0 0.0
    %437 = vmatpush1.msra.mxu0 %v424
    %438 = vmatprep.subr.mxu0 0.0
    %439 = vmatpush1.msra.mxu0 %v423
    %440 = vmatprep.subr.mxu0 0.0
    %441 = vmatpush1.msra.mxu0 %v422
    %442 = vmatprep.subr.mxu0 0.0
    %443 = vmatpush1.msra.mxu0 %v421
    %444 = vmatprep.subr.mxu0 0.0
    %445 = vmatpush1.msra.mxu0 %v420
    %446 = vmatprep.subr.mxu0 0.0
    %447 = vmatpush1.msra.mxu0 %v419
    %448 = vmatprep.subr.mxu0 0.0
    %449 = vmatpush1.msra.mxu0 %v418
    %450 = vmatprep.subr.mxu0 0.0
    %451 = vmatpush1.msra.mxu0 %v417
    %452 = vmatprep.subr.mxu0 0.0
    %453 = vmatpush1.msra.mxu0 %v416
    %454 = vmatprep.subr.mxu0 0.0
    %455 = vmatpush1.msra.mxu0 %v415
    %456 = vmatprep.subr.mxu0 0.0
    %457 = vmatpush1.msra.mxu0 %v414
    %458 = vmatprep.subr.mxu0 0.0
    %459 = vmatpush1.msra.mxu0 %v413
    %460 = vmatprep.subr.mxu0 0.0
    %461 = vmatpush1.msra.mxu0 %v412
    %462 = vmatprep.subr.mxu0 0.0
    %463 = vmatpush1.msra.mxu0 %v411
    %464 = vmatprep.subr.mxu0 0.0
    %465 = vmatpush2.msra.mxu0 0.0
    %466 = vmatprep.subr.mxu0 0.0
    %467 = vmatpush2.msra.mxu0 0.0
    %468 = vmatprep.subr.mxu0 0.0
    %469 = vmatpush2.msra.mxu0 0.0
    %470 = vmatprep.subr.mxu0 0.0
    %471 = vmatpush2.msra.mxu0 0.0
    %472 = vmatprep.subr.mxu0 0.0
    %473 = vmatpush2.msra.mxu0 0.0
    %474 = vmatprep.subr.mxu0 0.0
    %475 = vmatpush2.msra.mxu0 0.0
    %476 = vmatprep.subr.mxu0 0.0
    %477 = vmatpush2.msra.mxu0 0.0
    %478 = vmatprep.subr.mxu0 0.0
    %479 = vmatpush2.msra.mxu0 0.0
    %480 = vmatprep.subr.mxu0 0.0
    %481 = vmatpush2.msra.mxu0 0.0
    %482 = vmatprep.subr.mxu0 0.0
    %483 = vmatpush2.msra.mxu0 0.0
    %484 = vmatprep.subr.mxu0 0.0
    %485 = vmatpush2.msra.mxu0 0.0
    %486 = vmatprep.subr.mxu0 0.0
    %487 = vmatpush2.msra.mxu0 0.0
    %488 = vmatprep.subr.mxu0 0.0
    %489 = vmatpush2.msra.mxu0 0.0
    %490 = vmatprep.subr.mxu0 0.0
    %491 = vmatpush2.msra.mxu0 0.0
    %492 = vmatprep.subr.mxu0 0.0
    %493 = vmatpush2.msra.mxu0 0.0
    %494 = vmatprep.subr.mxu0 0.0
    %495 = vmatpush2.msra.mxu0 0.0
    %496 = vmatprep.mubr.f32.mxu0 0.0
    %497 = vmatmul.mubr.f32.gmra.mxu0 %v408
    %v498 = vpop.f32.mrf.mxu0
    %v499 = vadd.f32 %v431, %v498
    %v500 = vpop.f32.mrf.mxu0
    %501 = vdwg.mxu0
    %v502 = vmax.f32 %v499, 0.0
    %v503 = vld [vmem:[#allocation13] sm:$0xff]
    %v504 = vld [vmem:[#allocation13 + $0x8] sm:$0xff]
    %v505 = vld [vmem:[#allocation13 + $0x10] sm:$0xff]
    %v506 = vld [vmem:[#allocation13 + $0x18] sm:$0xff]
    %v507 = vld [vmem:[#allocation13 + $0x20] sm:$0xff]
    %v508 = vld [vmem:[#allocation13 + $0x28] sm:$0xff]
    %v509 = vld [vmem:[#allocation13 + $0x30] sm:$0xff]
    %v510 = vld [vmem:[#allocation13 + $0x38] sm:$0xff]
    %v511 = vld [vmem:[#allocation13 + $0x40] sm:$0xff]
    %v512 = vld [vmem:[#allocation13 + $0x48] sm:$0xff]
    %v513 = vld [vmem:[#allocation13 + $0x50] sm:$0xff]
    %v514 = vld [vmem:[#allocation13 + $0x58] sm:$0xff]
    %v515 = vld [vmem:[#allocation13 + $0x60] sm:$0xff]
    %v516 = vld [vmem:[#allocation13 + $0x68] sm:$0xff]
    %v517 = vld [vmem:[#allocation13 + $0x70] sm:$0xff]
    %v518 = vld [vmem:[#allocation13 + $0x78] sm:$0xff]
    %v519 = vld [vmem:[#allocation5 + $0x4] sm:$0x1]
    %v520 = vlaneseq
    %v521 = vshrl.u32 %v520, 7
    %v522 = vsub.s32 0, %v521
    %v523 = vrot.slane %v519, %v522
    %524 = vmatprep.subr.mxu0 0.0
    %525 = vmatpush1.msra.mxu0 %v518
    %526 = vmatprep.subr.mxu0 0.0
    %527 = vmatpush1.msra.mxu0 %v517
    %528 = vmatprep.subr.mxu0 0.0
    %529 = vmatpush1.msra.mxu0 %v516
    %530 = vmatprep.subr.mxu0 0.0
    %531 = vmatpush1.msra.mxu0 %v515
    %532 = vmatprep.subr.mxu0 0.0
    %533 = vmatpush1.msra.mxu0 %v514
    %534 = vmatprep.subr.mxu0 0.0
    %535 = vmatpush1.msra.mxu0 %v513
    %536 = vmatprep.subr.mxu0 0.0
    %537 = vmatpush1.msra.mxu0 %v512
    %538 = vmatprep.subr.mxu0 0.0
    %539 = vmatpush1.msra.mxu0 %v511
    %540 = vmatprep.subr.mxu0 0.0
    %541 = vmatpush1.msra.mxu0 %v510
    %542 = vmatprep.subr.mxu0 0.0
    %543 = vmatpush1.msra.mxu0 %v509
    %544 = vmatprep.subr.mxu0 0.0
    %545 = vmatpush1.msra.mxu0 %v508
    %546 = vmatprep.subr.mxu0 0.0
    %547 = vmatpush1.msra.mxu0 %v507
    %548 = vmatprep.subr.mxu0 0.0
    %549 = vmatpush1.msra.mxu0 %v506
    %550 = vmatprep.subr.mxu0 0.0
    %551 = vmatpush1.msra.mxu0 %v505
    %552 = vmatprep.subr.mxu0 0.0
    %553 = vmatpush1.msra.mxu0 %v504
    %554 = vmatprep.subr.mxu0 0.0
    %555 = vmatpush1.msra.mxu0 %v503
    %556 = vmatprep.subr.mxu0 0.0
    %557 = vmatpush2.msra.mxu0 0.0
    %558 = vmatprep.subr.mxu0 0.0
    %559 = vmatpush2.msra.mxu0 0.0
    %560 = vmatprep.subr.mxu0 0.0
    %561 = vmatpush2.msra.mxu0 0.0
    %562 = vmatprep.subr.mxu0 0.0
    %563 = vmatpush2.msra.mxu0 0.0
    %564 = vmatprep.subr.mxu0 0.0
    %565 = vmatpush2.msra.mxu0 0.0
    %566 = vmatprep.subr.mxu0 0.0
    %567 = vmatpush2.msra.mxu0 0.0
    %568 = vmatprep.subr.mxu0 0.0
    %569 = vmatpush2.msra.mxu0 0.0
    %570 = vmatprep.subr.mxu0 0.0
    %571 = vmatpush2.msra.mxu0 0.0
    %572 = vmatprep.subr.mxu0 0.0
    %573 = vmatpush2.msra.mxu0 0.0
    %574 = vmatprep.subr.mxu0 0.0
    %575 = vmatpush2.msra.mxu0 0.0
    %576 = vmatprep.subr.mxu0 0.0
    %577 = vmatpush2.msra.mxu0 0.0
    %578 = vmatprep.subr.mxu0 0.0
    %579 = vmatpush2.msra.mxu0 0.0
    %580 = vmatprep.subr.mxu0 0.0
    %581 = vmatpush2.msra.mxu0 0.0
    %582 = vmatprep.subr.mxu0 0.0
    %583 = vmatpush2.msra.mxu0 0.0
    %584 = vmatprep.subr.mxu0 0.0
    %585 = vmatpush2.msra.mxu0 0.0
    %586 = vmatprep.subr.mxu0 0.0
    %587 = vmatpush2.msra.mxu0 0.0
    %588 = vmatprep.mubr.f32.mxu0 0.0
    %589 = vmatmul.mubr.f32.gmra.mxu0 %v502
    %v590 = vpop.f32.mrf.mxu0
    %v591 = vadd.f32 %v523, %v590
    %v592 = vpop.f32.mrf.mxu0
    %593 = vdwg.mxu0
    %v594 = vmax.f32 %v591, 0.0
    %v595 = vld [vmem:[#allocation14] sm:$0xff]
    %v596 = vld [vmem:[#allocation14 + $0x8] sm:$0xff]
    %v597 = vld [vmem:[#allocation14 + $0x10] sm:$0xff]
    %v598 = vld [vmem:[#allocation14 + $0x18] sm:$0xff]
    %v599 = vld [vmem:[#allocation14 + $0x20] sm:$0xff]
    %v600 = vld [vmem:[#allocation14 + $0x28] sm:$0xff]
    %v601 = vld [vmem:[#allocation14 + $0x30] sm:$0xff]
    %v602 = vld [vmem:[#allocation14 + $0x38] sm:$0xff]
    %v603 = vld [vmem:[#allocation14 + $0x40] sm:$0xff]
    %v604 = vld [vmem:[#allocation14 + $0x48] sm:$0xff]
    %v605 = vld [vmem:[#allocation14 + $0x50] sm:$0xff]
    %v606 = vld [vmem:[#allocation14 + $0x58] sm:$0xff]
    %v607 = vld [vmem:[#allocation14 + $0x60] sm:$0xff]
    %v608 = vld [vmem:[#allocation14 + $0x68] sm:$0xff]
    %v609 = vld [vmem:[#allocation14 + $0x70] sm:$0xff]
    %v610 = vld [vmem:[#allocation14 + $0x78] sm:$0xff]
    %v611 = vld [vmem:[#allocation5 + $0x5] sm:$0x1]
    %v612 = vlaneseq
    %v613 = vshrl.u32 %v612, 7
    %v614 = vsub.s32 0, %v613
    %v615 = vrot.slane %v611, %v614
    %616 = vmatprep.subr.mxu0 0.0
    %617 = vmatpush1.msra.mxu0 %v610
    %618 = vmatprep.subr.mxu0 0.0
    %619 = vmatpush1.msra.mxu0 %v609
    %620 = vmatprep.subr.mxu0 0.0
    %621 = vmatpush1.msra.mxu0 %v608
    %622 = vmatprep.subr.mxu0 0.0
    %623 = vmatpush1.msra.mxu0 %v607
    %624 = vmatprep.subr.mxu0 0.0
    %625 = vmatpush1.msra.mxu0 %v606
    %626 = vmatprep.subr.mxu0 0.0
    %627 = vmatpush1.msra.mxu0 %v605
    %628 = vmatprep.subr.mxu0 0.0
    %629 = vmatpush1.msra.mxu0 %v604
    %630 = vmatprep.subr.mxu0 0.0
    %631 = vmatpush1.msra.mxu0 %v603
    %632 = vmatprep.subr.mxu0 0.0
    %633 = vmatpush1.msra.mxu0 %v602
    %634 = vmatprep.subr.mxu0 0.0
    %635 = vmatpush1.msra.mxu0 %v601
    %636 = vmatprep.subr.mxu0 0.0
    %637 = vmatpush1.msra.mxu0 %v600
    %638 = vmatprep.subr.mxu0 0.0
    %639 = vmatpush1.msra.mxu0 %v599
    %640 = vmatprep.subr.mxu0 0.0
    %641 = vmatpush1.msra.mxu0 %v598
    %642 = vmatprep.subr.mxu0 0.0
    %643 = vmatpush1.msra.mxu0 %v597
    %644 = vmatprep.subr.mxu0 0.0
    %645 = vmatpush1.msra.mxu0 %v596
    %646 = vmatprep.subr.mxu0 0.0
    %647 = vmatpush1.msra.mxu0 %v595
    %648 = vmatprep.subr.mxu0 0.0
    %649 = vmatpush2.msra.mxu0 0.0
    %650 = vmatprep.subr.mxu0 0.0
    %651 = vmatpush2.msra.mxu0 0.0
    %652 = vmatprep.subr.mxu0 0.0
    %653 = vmatpush2.msra.mxu0 0.0
    %654 = vmatprep.subr.mxu0 0.0
    %655 = vmatpush2.msra.mxu0 0.0
    %656 = vmatprep.subr.mxu0 0.0
    %657 = vmatpush2.msra.mxu0 0.0
    %658 = vmatprep.subr.mxu0 0.0
    %659 = vmatpush2.msra.mxu0 0.0
    %660 = vmatprep.subr.mxu0 0.0
    %661 = vmatpush2.msra.mxu0 0.0
    %662 = vmatprep.subr.mxu0 0.0
    %663 = vmatpush2.msra.mxu0 0.0
    %664 = vmatprep.subr.mxu0 0.0
    %665 = vmatpush2.msra.mxu0 0.0
    %666 = vmatprep.subr.mxu0 0.0
    %667 = vmatpush2.msra.mxu0 0.0
    %668 = vmatprep.subr.mxu0 0.0
    %669 = vmatpush2.msra.mxu0 0.0
    %670 = vmatprep.subr.mxu0 0.0
    %671 = vmatpush2.msra.mxu0 0.0
    %672 = vmatprep.subr.mxu0 0.0
    %673 = vmatpush2.msra.mxu0 0.0
    %674 = vmatprep.subr.mxu0 0.0
    %675 = vmatpush2.msra.mxu0 0.0
    %676 = vmatprep.subr.mxu0 0.0
    %677 = vmatpush2.msra.mxu0 0.0
    %678 = vmatprep.subr.mxu0 0.0
    %679 = vmatpush2.msra.mxu0 0.0
    %680 = vmatprep.mubr.f32.mxu0 0.0
    %681 = vmatmul.mubr.f32.gmra.mxu0 %v594
    %v682 = vpop.f32.mrf.mxu0
    %v683 = vadd.f32 %v615, %v682
    %v684 = vpop.f32.mrf.mxu0
    %685 = vdwg.mxu0
    %686 = vst [vmem:[#allocation16] sm:$0xff] %v683
    // Predicated region
    $region66: #{tpu_custom_call.1} parent=1 // pred_check
      _
    $region67: #{tpu_custom_call.1} parent=1 // pred_check_branch
      %688 = sbr.rel (0) target = $region69
    $region68: #{tpu_custom_call.1} parent=1 // pred_region
      %s690 = ssub.s32 128, 128
      %691 = vsyncadd [#allocation4], %s690
      %s693 = sshll.u32 [#allocation16], 4
      %s694 = int_to_ptr.vmem [resolvable:$true] %s693
      %696 = dma.vmem_to_hbm [thread:$0]  %s694, 128, %s8, [#allocation4]
    $region69: #{tpu_custom_call.1} parent=1 // pred_fallthru
      _
    // Predicated region
    $region70: #{tpu_custom_call.1} parent=1 // pred_check
      _
    $region71: #{tpu_custom_call.1} parent=1 // pred_check_branch
      %698 = sbr.rel (0) target = $region73
    $region72: #{tpu_custom_call.1} parent=1 // pred_region
      %699 = dma.done [#allocation4], 128
    $region73: #{tpu_custom_call.1} parent=1 // pred_fallthru
      _
    %700 = vsyncpa [#allocation3], 1
    %701 = vsyncpa [#allocation6], 1
    %702 = vsyncpa [#allocation9], 1
    %703 = vsyncpa [#allocation12], 1
    %704 = vsyncpa [#allocation15], 1
    %705 = vsyncpa [#allocation4], 1

// kernel: tpu_custom_call.1
$region0: #{tpu_custom_call.1}
  #allocation0 [shape = 'u32[]', space=smem, size = 0x4, offset = 0x4, fixed_abs, tag = 'smem constant byte address 0x4 - core index']
  #allocation1 [shape = 'u32[144,128]{1,0:T(1,128)}', space=vmem, size = 0x12000, scoped, tag = 'internal scratch']
  %s0 = inlined_call_operand.hbm [shape: f32[8,128], index: 0, kind: input, shape index: {}]
  %s1 = inlined_call_operand.hbm [shape: f32[6,128], index: 1, kind: input, shape index: {}]
  %s2 = inlined_call_operand.hbm [shape: f32[128,128], index: 2, kind: input, shape index: {}]
  %s3 = inlined_call_operand.hbm [shape: f32[128,128], index: 3, kind: input, shape index: {}]
  %s4 = inlined_call_operand.hbm [shape: f32[128,128], index: 4, kind: input, shape index: {}]
  %s5 = inlined_call_operand.hbm [shape: f32[128,128], index: 5, kind: input, shape index: {}]
  %s6 = inlined_call_operand.hbm [shape: f32[128,128], index: 6, kind: input, shape index: {}]
  %s7 = inlined_call_operand.hbm [shape: f32[128,128], index: 7, kind: input, shape index: {}]
  %s8 = inlined_call_operand.hbm [shape: f32[8,128], index: 8, kind: output, shape index: {}]
  %s9 = sld [smem:[#allocation0]]
  $region74: #{tpu_custom_call.1} parent=0
    _
  %s11 = ssub.s32 1, %s9
  %s12 = scalar_select 0, %s11, %s9
  $region1: #{tpu_custom_call.1} parent=0
    #allocation2 [shape = 'u8[4096]{0}', space=vmem, size = 0x1000, scoped, tag = 'input window, operand 0, single buffered']
    #allocation3 [shape = 's32[1]{0}', space=sflag, size = 0x4, scoped, tag = 'scoped memory for tpu_custom_call.1']
    #allocation4 [shape = 's32[1]{0}', space=sflag, size = 0x4, scoped, tag = 'scoped memory for tpu_custom_call.1']
    #allocation5 [shape = 'u8[4096]{0}', space=vmem, size = 0x1000, scoped, tag = 'input window, operand 1, single buffered']
    #allocation6 [shape = 's32[1]{0}', space=sflag, size = 0x4, scoped, tag = 'scoped memory for tpu_custom_call.1']
    #allocation7 [shape = 'u8[65536]{0}', space=vmem, size = 0x10000, scoped, tag = 'input window, operand 2, single buffered']
    #allocation8 [shape = 'u8[65536]{0}', space=vmem, size = 0x10000, scoped, tag = 'input window, operand 3, single buffered']
    #allocation9 [shape = 's32[1]{0}', space=sflag, size = 0x4, scoped, tag = 'scoped memory for tpu_custom_call.1']
    #allocation10 [shape = 'u8[65536]{0}', space=vmem, size = 0x10000, scoped, tag = 'input window, operand 4, single buffered']
    #allocation11 [shape = 'u8[65536]{0}', space=vmem, size = 0x10000, scoped, tag = 'input window, operand 5, single buffered']
    #allocation12 [shape = 's32[1]{0}', space=sflag, size = 0x4, scoped, tag = 'scoped memory for tpu_custom_call.1']
    #allocation13 [shape = 'u8[65536]{0}', space=vmem, size = 0x10000, scoped, tag = 'input window, operand 6, single buffered']
    #allocation14 [shape = 'u8[65536]{0}', space=vmem, size = 0x10000, scoped, tag = 'input window, operand 7, single buffered']
    #allocation15 [shape = 's32[1]{0}', space=sflag, size = 0x4, scoped, tag = 'scoped memory for tpu_custom_call.1']
    #allocation16 [shape = 'u8[4096]{0}', space=vmem, size = 0x1000, scoped, tag = 'output window, operand 0, single buffered']
    %13 = vsyncpa [#allocation3], 0
    %14 = vsyncpa [#allocation6], 0
    %15 = vsyncpa [#allocation9], 0
    %16 = vsyncpa [#allocation12], 0
    %17 = vsyncpa [#allocation15], 0
    %18 = vsyncpa [#allocation4], 0
    // Predicated region
    $region2: #{tpu_custom_call.1} parent=1 // pred_check
      _
    $region3: #{tpu_custom_call.1} parent=1 // pred_check_branch
      %20 = sbr.rel (0) target = $region5
    $region4: #{tpu_custom_call.1} parent=1 // pred_region
      %s22 = ssub.s32 128, 128
      %23 = vsyncadd [#allocation3], %s22
      %s25 = sshll.u32 [#allocation2], 4
      %s26 = int_to_ptr.vmem [resolvable:$true] %s25
      %28 = dma.hbm_to_vmem [thread:$0]  %s0, 128, %s26, [#allocation3]
    $region5: #{tpu_custom_call.1} parent=1 // pred_fallthru
      _
    // Predicated region
    $region6: #{tpu_custom_call.1} parent=1 // pred_check
      _
    $region7: #{tpu_custom_call.1} parent=1 // pred_check_branch
      %30 = sbr.rel (0) target = $region9
    $region8: #{tpu_custom_call.1} parent=1 // pred_region
      %s32 = ssub.s32 128, 128
      %33 = vsyncadd [#allocation6], %s32
      %s35 = sshll.u32 [#allocation5], 4
      %s36 = int_to_ptr.vmem [resolvable:$true] %s35
      %38 = dma.hbm_to_vmem [thread:$0]  %s1, 128, %s36, [#allocation6]
    $region9: #{tpu_custom_call.1} parent=1 // pred_fallthru
      _
    // Predicated region
    $region10: #{tpu_custom_call.1} parent=1 // pred_check
      _
    $region11: #{tpu_custom_call.1} parent=1 // pred_check_branch
      %40 = sbr.rel (0) target = $region13
    $region12: #{tpu_custom_call.1} parent=1 // pred_region
      %s42 = ssub.s32 2048, 2048
      %43 = vsyncadd [#allocation6], %s42
      %s44 = sshll.u32 [#allocation7], 4
      %s45 = int_to_ptr.vmem [resolvable:$true] %s44
      %50 = dma.hbm_to_vmem [thread:$0]  %s2, 2048, %s45, [#allocation6], 128, 128, 8
    $region13: #{tpu_custom_call.1} parent=1 // pred_fallthru
      _
    // Predicated region
    $region14: #{tpu_custom_call.1} parent=1 // pred_check
      _
    $region15: #{tpu_custom_call.1} parent=1 // pred_check_branch
      %52 = sbr.rel (0) target = $region17
    $region16: #{tpu_custom_call.1} parent=1 // pred_region
      %s54 = ssub.s32 2048, 2048
      %55 = vsyncadd [#allocation9], %s54
      %s56 = sshll.u32 [#allocation8], 4
      %s57 = int_to_ptr.vmem [resolvable:$true] %s56
      %62 = dma.hbm_to_vmem [thread:$0]  %s3, 2048, %s57, [#allocation9], 128, 128, 8
    $region17: #{tpu_custom_call.1} parent=1 // pred_fallthru
      _
    // Predicated region
    $region18: #{tpu_custom_call.1} parent=1 // pred_check
      _
    $region19: #{tpu_custom_call.1} parent=1 // pred_check_branch
      %64 = sbr.rel (0) target = $region21
    $region20: #{tpu_custom_call.1} parent=1 // pred_region
      %s66 = ssub.s32 2048, 2048
      %67 = vsyncadd [#allocation9], %s66
      %s68 = sshll.u32 [#allocation10], 4
      %s69 = int_to_ptr.vmem [resolvable:$true] %s68
      %74 = dma.hbm_to_vmem [thread:$0]  %s4, 2048, %s69, [#allocation9], 128, 128, 8
    $region21: #{tpu_custom_call.1} parent=1 // pred_fallthru
      _
    // Predicated region
    $region22: #{tpu_custom_call.1} parent=1 // pred_check
      _
    $region23: #{tpu_custom_call.1} parent=1 // pred_check_branch
      %76 = sbr.rel (0) target = $region25
    $region24: #{tpu_custom_call.1} parent=1 // pred_region
      %s78 = ssub.s32 2048, 2048
      %79 = vsyncadd [#allocation12], %s78
      %s80 = sshll.u32 [#allocation11], 4
      %s81 = int_to_ptr.vmem [resolvable:$true] %s80
      %86 = dma.hbm_to_vmem [thread:$0]  %s5, 2048, %s81, [#allocation12], 128, 128, 8
    $region25: #{tpu_custom_call.1} parent=1 // pred_fallthru
      _
    // Predicated region
    $region26: #{tpu_custom_call.1} parent=1 // pred_check
      _
    $region27: #{tpu_custom_call.1} parent=1 // pred_check_branch
      %88 = sbr.rel (0) target = $region29
    $region28: #{tpu_custom_call.1} parent=1 // pred_region
      %s90 = ssub.s32 2048, 2048
      %91 = vsyncadd [#allocation12], %s90
      %s92 = sshll.u32 [#allocation13], 4
      %s93 = int_to_ptr.vmem [resolvable:$true] %s92
      %98 = dma.hbm_to_vmem [thread:$0]  %s6, 2048, %s93, [#allocation12], 128, 128, 8
    $region29: #{tpu_custom_call.1} parent=1 // pred_fallthru
      _
    // Predicated region
    $region30: #{tpu_custom_call.1} parent=1 // pred_check
      _
    $region31: #{tpu_custom_call.1} parent=1 // pred_check_branch
      %100 = sbr.rel (0) target = $region33
    $region32: #{tpu_custom_call.1} parent=1 // pred_region
      %s102 = ssub.s32 2048, 2048
      %103 = vsyncadd [#allocation15], %s102
      %s104 = sshll.u32 [#allocation14], 4
      %s105 = int_to_ptr.vmem [resolvable:$true] %s104
      %110 = dma.hbm_to_vmem [thread:$0]  %s7, 2048, %s105, [#allocation15], 128, 128, 8
    $region33: #{tpu_custom_call.1} parent=1 // pred_fallthru
      _
    // Predicated region
    $region34: #{tpu_custom_call.1} parent=1 // pred_check
      _
    $region35: #{tpu_custom_call.1} parent=1 // pred_check_branch
      %112 = sbr.rel (0) target = $region37
    $region36: #{tpu_custom_call.1} parent=1 // pred_region
      %113 = dma.done [#allocation3], 128
    $region37: #{tpu_custom_call.1} parent=1 // pred_fallthru
      _
    // Predicated region
    $region38: #{tpu_custom_call.1} parent=1 // pred_check
      _
    $region39: #{tpu_custom_call.1} parent=1 // pred_check_branch
      %115 = sbr.rel (0) target = $region41
    $region40: #{tpu_custom_call.1} parent=1 // pred_region
      %116 = dma.done [#allocation6], 128
    $region41: #{tpu_custom_call.1} parent=1 // pred_fallthru
      _
    // Predicated region
    $region42: #{tpu_custom_call.1} parent=1 // pred_check
      _
    $region43: #{tpu_custom_call.1} parent=1 // pred_check_branch
      %118 = sbr.rel (0) target = $region45
    $region44: #{tpu_custom_call.1} parent=1 // pred_region
      %119 = dma.done [#allocation6], 2048
    $region45: #{tpu_custom_call.1} parent=1 // pred_fallthru
      _
    // Predicated region
    $region46: #{tpu_custom_call.1} parent=1 // pred_check
      _
    $region47: #{tpu_custom_call.1} parent=1 // pred_check_branch
      %121 = sbr.rel (0) target = $region49
    $region48: #{tpu_custom_call.1} parent=1 // pred_region
      %122 = dma.done [#allocation9], 2048
    $region49: #{tpu_custom_call.1} parent=1 // pred_fallthru
      _
    // Predicated region
    $region50: #{tpu_custom_call.1} parent=1 // pred_check
      _
    $region51: #{tpu_custom_call.1} parent=1 // pred_check_branch
      %124 = sbr.rel (0) target = $region53
    $region52: #{tpu_custom_call.1} parent=1 // pred_region
      %125 = dma.done [#allocation9], 2048
    $region53: #{tpu_custom_call.1} parent=1 // pred_fallthru
      _
    // Predicated region
    $region54: #{tpu_custom_call.1} parent=1 // pred_check
      _
    $region55: #{tpu_custom_call.1} parent=1 // pred_check_branch
      %127 = sbr.rel (0) target = $region57
    $region56: #{tpu_custom_call.1} parent=1 // pred_region
      %128 = dma.done [#allocation12], 2048
    $region57: #{tpu_custom_call.1} parent=1 // pred_fallthru
      _
    // Predicated region
    $region58: #{tpu_custom_call.1} parent=1 // pred_check
      _
    $region59: #{tpu_custom_call.1} parent=1 // pred_check_branch
      %130 = sbr.rel (0) target = $region61
    $region60: #{tpu_custom_call.1} parent=1 // pred_region
      %131 = dma.done [#allocation12], 2048
    $region61: #{tpu_custom_call.1} parent=1 // pred_fallthru
      _
    // Predicated region
    $region62: #{tpu_custom_call.1} parent=1 // pred_check
      _
    $region63: #{tpu_custom_call.1} parent=1 // pred_check_branch
      %133 = sbr.rel (0) target = $region65
    $region64: #{tpu_custom_call.1} parent=1 // pred_region
      %134 = dma.done [#allocation15], 2048
    $region65: #{tpu_custom_call.1} parent=1 // pred_fallthru
      _
    %v135 = vld [vmem:[#allocation2] sm:$0xff]
    %v136 = vld [vmem:[#allocation7] sm:$0xff]
    %v137 = vld [vmem:[#allocation7 + $0x8] sm:$0xff]
    %v138 = vld [vmem:[#allocation7 + $0x10] sm:$0xff]
    %v139 = vld [vmem:[#allocation7 + $0x18] sm:$0xff]
    %v140 = vld [vmem:[#allocation7 + $0x20] sm:$0xff]
    %v141 = vld [vmem:[#allocation7 + $0x28] sm:$0xff]
    %v142 = vld [vmem:[#allocation7 + $0x30] sm:$0xff]
    %v143 = vld [vmem:[#allocation7 + $0x38] sm:$0xff]
    %v144 = vld [vmem:[#allocation7 + $0x40] sm:$0xff]
    %v145 = vld [vmem:[#allocation7 + $0x48] sm:$0xff]
    %v146 = vld [vmem:[#allocation7 + $0x50] sm:$0xff]
    %v147 = vld [vmem:[#allocation7 + $0x58] sm:$0xff]
    %v148 = vld [vmem:[#allocation7 + $0x60] sm:$0xff]
    %v149 = vld [vmem:[#allocation7 + $0x68] sm:$0xff]
    %v150 = vld [vmem:[#allocation7 + $0x70] sm:$0xff]
    %v151 = vld [vmem:[#allocation7 + $0x78] sm:$0xff]
    %v152 = vld [vmem:[#allocation5] sm:$0x1]
    %v153 = vlaneseq
    %v154 = vshrl.u32 %v153, 7
    %v155 = vsub.s32 0, %v154
    %v156 = vrot.slane %v152, %v155
    %157 = vmatprep.subr.mxu0 0.0
    %158 = vmatpush1.msra.mxu0 %v151
    %159 = vmatprep.subr.mxu0 0.0
    %160 = vmatpush1.msra.mxu0 %v150
    %161 = vmatprep.subr.mxu0 0.0
    %162 = vmatpush1.msra.mxu0 %v149
    %163 = vmatprep.subr.mxu0 0.0
    %164 = vmatpush1.msra.mxu0 %v148
    %165 = vmatprep.subr.mxu0 0.0
    %166 = vmatpush1.msra.mxu0 %v147
    %167 = vmatprep.subr.mxu0 0.0
    %168 = vmatpush1.msra.mxu0 %v146
    %169 = vmatprep.subr.mxu0 0.0
    %170 = vmatpush1.msra.mxu0 %v145
    %171 = vmatprep.subr.mxu0 0.0
    %172 = vmatpush1.msra.mxu0 %v144
    %173 = vmatprep.subr.mxu0 0.0
    %174 = vmatpush1.msra.mxu0 %v143
    %175 = vmatprep.subr.mxu0 0.0
    %176 = vmatpush1.msra.mxu0 %v142
    %177 = vmatprep.subr.mxu0 0.0
    %178 = vmatpush1.msra.mxu0 %v141
    %179 = vmatprep.subr.mxu0 0.0
    %180 = vmatpush1.msra.mxu0 %v140
    %181 = vmatprep.subr.mxu0 0.0
    %182 = vmatpush1.msra.mxu0 %v139
    %183 = vmatprep.subr.mxu0 0.0
    %184 = vmatpush1.msra.mxu0 %v138
    %185 = vmatprep.subr.mxu0 0.0
    %186 = vmatpush1.msra.mxu0 %v137
    %187 = vmatprep.subr.mxu0 0.0
    %188 = vmatpush1.msra.mxu0 %v136
    %189 = vmatprep.subr.mxu0 0.0
    %190 = vmatpush2.msra.mxu0 0.0
    %191 = vmatprep.subr.mxu0 0.0
    %192 = vmatpush2.msra.mxu0 0.0
    %193 = vmatprep.subr.mxu0 0.0
    %194 = vmatpush2.msra.mxu0 0.0
    %195 = vmatprep.subr.mxu0 0.0
    %196 = vmatpush2.msra.mxu0 0.0
    %197 = vmatprep.subr.mxu0 0.0
    %198 = vmatpush2.msra.mxu0 0.0
    %199 = vmatprep.subr.mxu0 0.0
    %200 = vmatpush2.msra.mxu0 0.0
    %201 = vmatprep.subr.mxu0 0.0
    %202 = vmatpush2.msra.mxu0 0.0
    %203 = vmatprep.subr.mxu0 0.0
    %204 = vmatpush2.msra.mxu0 0.0
    %205 = vmatprep.subr.mxu0 0.0
    %206 = vmatpush2.msra.mxu0 0.0
    %207 = vmatprep.subr.mxu0 0.0
    %208 = vmatpush2.msra.mxu0 0.0
    %209 = vmatprep.subr.mxu0 0.0
    %210 = vmatpush2.msra.mxu0 0.0
    %211 = vmatprep.subr.mxu0 0.0
    %212 = vmatpush2.msra.mxu0 0.0
    %213 = vmatprep.subr.mxu0 0.0
    %214 = vmatpush2.msra.mxu0 0.0
    %215 = vmatprep.subr.mxu0 0.0
    %216 = vmatpush2.msra.mxu0 0.0
    %217 = vmatprep.subr.mxu0 0.0
    %218 = vmatpush2.msra.mxu0 0.0
    %219 = vmatprep.subr.mxu0 0.0
    %220 = vmatpush2.msra.mxu0 0.0
    %221 = vmatprep.mubr.f32.mxu0 0.0
    %222 = vmatmul.mubr.f32.gmra.mxu0 %v135
    %v223 = vpop.f32.mrf.mxu0
    %v224 = vadd.f32 %v156, %v223
    %v225 = vpop.f32.mrf.mxu0
    %226 = vdwg.mxu0
    %v227 = vmax.f32 %v224, 0.0
    %v228 = vld [vmem:[#allocation8] sm:$0xff]
    %v229 = vld [vmem:[#allocation8 + $0x8] sm:$0xff]
    %v230 = vld [vmem:[#allocation8 + $0x10] sm:$0xff]
    %v231 = vld [vmem:[#allocation8 + $0x18] sm:$0xff]
    %v232 = vld [vmem:[#allocation8 + $0x20] sm:$0xff]
    %v233 = vld [vmem:[#allocation8 + $0x28] sm:$0xff]
    %v234 = vld [vmem:[#allocation8 + $0x30] sm:$0xff]
    %v235 = vld [vmem:[#allocation8 + $0x38] sm:$0xff]
    %v236 = vld [vmem:[#allocation8 + $0x40] sm:$0xff]
    %v237 = vld [vmem:[#allocation8 + $0x48] sm:$0xff]
    %v238 = vld [vmem:[#allocation8 + $0x50] sm:$0xff]
    %v239 = vld [vmem:[#allocation8 + $0x58] sm:$0xff]
    %v240 = vld [vmem:[#allocation8 + $0x60] sm:$0xff]
    %v241 = vld [vmem:[#allocation8 + $0x68] sm:$0xff]
    %v242 = vld [vmem:[#allocation8 + $0x70] sm:$0xff]
    %v243 = vld [vmem:[#allocation8 + $0x78] sm:$0xff]
    %v244 = vld [vmem:[#allocation5 + $0x1] sm:$0x1]
    %v245 = vlaneseq
    %v246 = vshrl.u32 %v245, 7
    %v247 = vsub.s32 0, %v246
    %v248 = vrot.slane %v244, %v247
    %249 = vmatprep.subr.mxu0 0.0
    %250 = vmatpush1.msra.mxu0 %v243
    %251 = vmatprep.subr.mxu0 0.0
    %252 = vmatpush1.msra.mxu0 %v242
    %253 = vmatprep.subr.mxu0 0.0
    %254 = vmatpush1.msra.mxu0 %v241
    %255 = vmatprep.subr.mxu0 0.0
    %256 = vmatpush1.msra.mxu0 %v240
    %257 = vmatprep.subr.mxu0 0.0
    %258 = vmatpush1.msra.mxu0 %v239
    %259 = vmatprep.subr.mxu0 0.0
    %260 = vmatpush1.msra.mxu0 %v238
    %261 = vmatprep.subr.mxu0 0.0
    %262 = vmatpush1.msra.mxu0 %v237
    %263 = vmatprep.subr.mxu0 0.0
    %264 = vmatpush1.msra.mxu0 %v236
    %265 = vmatprep.subr.mxu0 0.0
    %266 = vmatpush1.msra.mxu0 %v235
    %267 = vmatprep.subr.mxu0 0.0
    %268 = vmatpush1.msra.mxu0 %v234
    %269 = vmatprep.subr.mxu0 0.0
    %270 = vmatpush1.msra.mxu0 %v233
    %271 = vmatprep.subr.mxu0 0.0
    %272 = vmatpush1.msra.mxu0 %v232
    %273 = vmatprep.subr.mxu0 0.0
    %274 = vmatpush1.msra.mxu0 %v231
    %275 = vmatprep.subr.mxu0 0.0
    %276 = vmatpush1.msra.mxu0 %v230
    %277 = vmatprep.subr.mxu0 0.0
    %278 = vmatpush1.msra.mxu0 %v229
    %279 = vmatprep.subr.mxu0 0.0
    %280 = vmatpush1.msra.mxu0 %v228
    %281 = vmatprep.subr.mxu0 0.0
    %282 = vmatpush2.msra.mxu0 0.0
    %283 = vmatprep.subr.mxu0 0.0
    %284 = vmatpush2.msra.mxu0 0.0
    %285 = vmatprep.subr.mxu0 0.0
    %286 = vmatpush2.msra.mxu0 0.0
    %287 = vmatprep.subr.mxu0 0.0
    %288 = vmatpush2.msra.mxu0 0.0
    %289 = vmatprep.subr.mxu0 0.0
    %290 = vmatpush2.msra.mxu0 0.0
    %291 = vmatprep.subr.mxu0 0.0
    %292 = vmatpush2.msra.mxu0 0.0
    %293 = vmatprep.subr.mxu0 0.0
    %294 = vmatpush2.msra.mxu0 0.0
    %295 = vmatprep.subr.mxu0 0.0
    %296 = vmatpush2.msra.mxu0 0.0
    %297 = vmatprep.subr.mxu0 0.0
    %298 = vmatpush2.msra.mxu0 0.0
    %299 = vmatprep.subr.mxu0 0.0
    %300 = vmatpush2.msra.mxu0 0.0
    %301 = vmatprep.subr.mxu0 0.0
    %302 = vmatpush2.msra.mxu0 0.0
    %303 = vmatprep.subr.mxu0 0.0
    %304 = vmatpush2.msra.mxu0 0.0
    %305 = vmatprep.subr.mxu0 0.0
    %306 = vmatpush2.msra.mxu0 0.0
    %307 = vmatprep.subr.mxu0 0.0
    %308 = vmatpush2.msra.mxu0 0.0
    %309 = vmatprep.subr.mxu0 0.0
    %310 = vmatpush2.msra.mxu0 0.0
    %311 = vmatprep.subr.mxu0 0.0
    %312 = vmatpush2.msra.mxu0 0.0
    %313 = vmatprep.mubr.f32.mxu0 0.0
    %314 = vmatmul.mubr.f32.gmra.mxu0 %v227
    %v315 = vpop.f32.mrf.mxu0
    %v316 = vadd.f32 %v248, %v315
    %v317 = vpop.f32.mrf.mxu0
    %318 = vdwg.mxu0
    %v319 = vmax.f32 %v316, 0.0
    %v320 = vld [vmem:[#allocation10] sm:$0xff]
    %v321 = vld [vmem:[#allocation10 + $0x8] sm:$0xff]
    %v322 = vld [vmem:[#allocation10 + $0x10] sm:$0xff]
    %v323 = vld [vmem:[#allocation10 + $0x18] sm:$0xff]
    %v324 = vld [vmem:[#allocation10 + $0x20] sm:$0xff]
    %v325 = vld [vmem:[#allocation10 + $0x28] sm:$0xff]
    %v326 = vld [vmem:[#allocation10 + $0x30] sm:$0xff]
    %v327 = vld [vmem:[#allocation10 + $0x38] sm:$0xff]
    %v328 = vld [vmem:[#allocation10 + $0x40] sm:$0xff]
    %v329 = vld [vmem:[#allocation10 + $0x48] sm:$0xff]
    %v330 = vld [vmem:[#allocation10 + $0x50] sm:$0xff]
    %v331 = vld [vmem:[#allocation10 + $0x58] sm:$0xff]
    %v332 = vld [vmem:[#allocation10 + $0x60] sm:$0xff]
    %v333 = vld [vmem:[#allocation10 + $0x68] sm:$0xff]
    %v334 = vld [vmem:[#allocation10 + $0x70] sm:$0xff]
    %v335 = vld [vmem:[#allocation10 + $0x78] sm:$0xff]
    %v336 = vld [vmem:[#allocation5 + $0x2] sm:$0x1]
    %v337 = vlaneseq
    %v338 = vshrl.u32 %v337, 7
    %v339 = vsub.s32 0, %v338
    %v340 = vrot.slane %v336, %v339
    %341 = vmatprep.subr.mxu0 0.0
    %342 = vmatpush1.msra.mxu0 %v335
    %343 = vmatprep.subr.mxu0 0.0
    %344 = vmatpush1.msra.mxu0 %v334
    %345 = vmatprep.subr.mxu0 0.0
    %346 = vmatpush1.msra.mxu0 %v333
    %347 = vmatprep.subr.mxu0 0.0
    %348 = vmatpush1.msra.mxu0 %v332
    %349 = vmatprep.subr.mxu0 0.0
    %350 = vmatpush1.msra.mxu0 %v331
    %351 = vmatprep.subr.mxu0 0.0
    %352 = vmatpush1.msra.mxu0 %v330
    %353 = vmatprep.subr.mxu0 0.0
    %354 = vmatpush1.msra.mxu0 %v329
    %355 = vmatprep.subr.mxu0 0.0
    %356 = vmatpush1.msra.mxu0 %v328
    %357 = vmatprep.subr.mxu0 0.0
    %358 = vmatpush1.msra.mxu0 %v327
    %359 = vmatprep.subr.mxu0 0.0
    %360 = vmatpush1.msra.mxu0 %v326
    %361 = vmatprep.subr.mxu0 0.0
    %362 = vmatpush1.msra.mxu0 %v325
    %363 = vmatprep.subr.mxu0 0.0
    %364 = vmatpush1.msra.mxu0 %v324
    %365 = vmatprep.subr.mxu0 0.0
    %366 = vmatpush1.msra.mxu0 %v323
    %367 = vmatprep.subr.mxu0 0.0
    %368 = vmatpush1.msra.mxu0 %v322
    %369 = vmatprep.subr.mxu0 0.0
    %370 = vmatpush1.msra.mxu0 %v321
    %371 = vmatprep.subr.mxu0 0.0
    %372 = vmatpush1.msra.mxu0 %v320
    %373 = vmatprep.subr.mxu0 0.0
    %374 = vmatpush2.msra.mxu0 0.0
    %375 = vmatprep.subr.mxu0 0.0
    %376 = vmatpush2.msra.mxu0 0.0
    %377 = vmatprep.subr.mxu0 0.0
    %378 = vmatpush2.msra.mxu0 0.0
    %379 = vmatprep.subr.mxu0 0.0
    %380 = vmatpush2.msra.mxu0 0.0
    %381 = vmatprep.subr.mxu0 0.0
    %382 = vmatpush2.msra.mxu0 0.0
    %383 = vmatprep.subr.mxu0 0.0
    %384 = vmatpush2.msra.mxu0 0.0
    %385 = vmatprep.subr.mxu0 0.0
    %386 = vmatpush2.msra.mxu0 0.0
    %387 = vmatprep.subr.mxu0 0.0
    %388 = vmatpush2.msra.mxu0 0.0
    %389 = vmatprep.subr.mxu0 0.0
    %390 = vmatpush2.msra.mxu0 0.0
    %391 = vmatprep.subr.mxu0 0.0
    %392 = vmatpush2.msra.mxu0 0.0
    %393 = vmatprep.subr.mxu0 0.0
    %394 = vmatpush2.msra.mxu0 0.0
    %395 = vmatprep.subr.mxu0 0.0
    %396 = vmatpush2.msra.mxu0 0.0
    %397 = vmatprep.subr.mxu0 0.0
    %398 = vmatpush2.msra.mxu0 0.0
    %399 = vmatprep.subr.mxu0 0.0
    %400 = vmatpush2.msra.mxu0 0.0
    %401 = vmatprep.subr.mxu0 0.0
    %402 = vmatpush2.msra.mxu0 0.0
    %403 = vmatprep.subr.mxu0 0.0
    %404 = vmatpush2.msra.mxu0 0.0
    %405 = vmatprep.mubr.f32.mxu0 0.0
    %406 = vmatmul.mubr.f32.gmra.mxu0 %v319
    %v407 = vpop.f32.mrf.mxu0
    %v408 = vadd.f32 %v340, %v407
    %v409 = vpop.f32.mrf.mxu0
    %410 = vdwg.mxu0
    %v411 = vld [vmem:[#allocation11] sm:$0xff]
    %v412 = vld [vmem:[#allocation11 + $0x8] sm:$0xff]
    %v413 = vld [vmem:[#allocation11 + $0x10] sm:$0xff]
    %v414 = vld [vmem:[#allocation11 + $0x18] sm:$0xff]
    %v415 = vld [vmem:[#allocation11 + $0x20] sm:$0xff]
    %v416 = vld [vmem:[#allocation11 + $0x28] sm:$0xff]
    %v417 = vld [vmem:[#allocation11 + $0x30] sm:$0xff]
    %v418 = vld [vmem:[#allocation11 + $0x38] sm:$0xff]
    %v419 = vld [vmem:[#allocation11 + $0x40] sm:$0xff]
    %v420 = vld [vmem:[#allocation11 + $0x48] sm:$0xff]
    %v421 = vld [vmem:[#allocation11 + $0x50] sm:$0xff]
    %v422 = vld [vmem:[#allocation11 + $0x58] sm:$0xff]
    %v423 = vld [vmem:[#allocation11 + $0x60] sm:$0xff]
    %v424 = vld [vmem:[#allocation11 + $0x68] sm:$0xff]
    %v425 = vld [vmem:[#allocation11 + $0x70] sm:$0xff]
    %v426 = vld [vmem:[#allocation11 + $0x78] sm:$0xff]
    %v427 = vld [vmem:[#allocation5 + $0x3] sm:$0x1]
    %v428 = vlaneseq
    %v429 = vshrl.u32 %v428, 7
    %v430 = vsub.s32 0, %v429
    %v431 = vrot.slane %v427, %v430
    %432 = vmatprep.subr.mxu0 0.0
    %433 = vmatpush1.msra.mxu0 %v426
    %434 = vmatprep.subr.mxu0 0.0
    %435 = vmatpush1.msra.mxu0 %v425
    %436 = vmatprep.subr.mxu0 0.0
    %437 = vmatpush1.msra.mxu0 %v424
    %438 = vmatprep.subr.mxu0 0.0
    %439 = vmatpush1.msra.mxu0 %v423
    %440 = vmatprep.subr.mxu0 0.0
    %441 = vmatpush1.msra.mxu0 %v422
    %442 = vmatprep.subr.mxu0 0.0
    %443 = vmatpush1.msra.mxu0 %v421
    %444 = vmatprep.subr.mxu0 0.0
    %445 = vmatpush1.msra.mxu0 %v420
    %446 = vmatprep.subr.mxu0 0.0
    %447 = vmatpush1.msra.mxu0 %v419
    %448 = vmatprep.subr.mxu0 0.0
    %449 = vmatpush1.msra.mxu0 %v418
    %450 = vmatprep.subr.mxu0 0.0
    %451 = vmatpush1.msra.mxu0 %v417
    %452 = vmatprep.subr.mxu0 0.0
    %453 = vmatpush1.msra.mxu0 %v416
    %454 = vmatprep.subr.mxu0 0.0
    %455 = vmatpush1.msra.mxu0 %v415
    %456 = vmatprep.subr.mxu0 0.0
    %457 = vmatpush1.msra.mxu0 %v414
    %458 = vmatprep.subr.mxu0 0.0
    %459 = vmatpush1.msra.mxu0 %v413
    %460 = vmatprep.subr.mxu0 0.0
    %461 = vmatpush1.msra.mxu0 %v412
    %462 = vmatprep.subr.mxu0 0.0
    %463 = vmatpush1.msra.mxu0 %v411
    %464 = vmatprep.subr.mxu0 0.0
    %465 = vmatpush2.msra.mxu0 0.0
    %466 = vmatprep.subr.mxu0 0.0
    %467 = vmatpush2.msra.mxu0 0.0
    %468 = vmatprep.subr.mxu0 0.0
    %469 = vmatpush2.msra.mxu0 0.0
    %470 = vmatprep.subr.mxu0 0.0
    %471 = vmatpush2.msra.mxu0 0.0
    %472 = vmatprep.subr.mxu0 0.0
    %473 = vmatpush2.msra.mxu0 0.0
    %474 = vmatprep.subr.mxu0 0.0
    %475 = vmatpush2.msra.mxu0 0.0
    %476 = vmatprep.subr.mxu0 0.0
    %477 = vmatpush2.msra.mxu0 0.0
    %478 = vmatprep.subr.mxu0 0.0
    %479 = vmatpush2.msra.mxu0 0.0
    %480 = vmatprep.subr.mxu0 0.0
    %481 = vmatpush2.msra.mxu0 0.0
    %482 = vmatprep.subr.mxu0 0.0
    %483 = vmatpush2.msra.mxu0 0.0
    %484 = vmatprep.subr.mxu0 0.0
    %485 = vmatpush2.msra.mxu0 0.0
    %486 = vmatprep.subr.mxu0 0.0
    %487 = vmatpush2.msra.mxu0 0.0
    %488 = vmatprep.subr.mxu0 0.0
    %489 = vmatpush2.msra.mxu0 0.0
    %490 = vmatprep.subr.mxu0 0.0
    %491 = vmatpush2.msra.mxu0 0.0
    %492 = vmatprep.subr.mxu0 0.0
    %493 = vmatpush2.msra.mxu0 0.0
    %494 = vmatprep.subr.mxu0 0.0
    %495 = vmatpush2.msra.mxu0 0.0
    %496 = vmatprep.mubr.f32.mxu0 0.0
    %497 = vmatmul.mubr.f32.gmra.mxu0 %v408
    %v498 = vpop.f32.mrf.mxu0
    %v499 = vadd.f32 %v431, %v498
    %v500 = vpop.f32.mrf.mxu0
    %501 = vdwg.mxu0
    %v502 = vmax.f32 %v499, 0.0
    %v503 = vld [vmem:[#allocation13] sm:$0xff]
    %v504 = vld [vmem:[#allocation13 + $0x8] sm:$0xff]
    %v505 = vld [vmem:[#allocation13 + $0x10] sm:$0xff]
    %v506 = vld [vmem:[#allocation13 + $0x18] sm:$0xff]
    %v507 = vld [vmem:[#allocation13 + $0x20] sm:$0xff]
    %v508 = vld [vmem:[#allocation13 + $0x28] sm:$0xff]
    %v509 = vld [vmem:[#allocation13 + $0x30] sm:$0xff]
    %v510 = vld [vmem:[#allocation13 + $0x38] sm:$0xff]
    %v511 = vld [vmem:[#allocation13 + $0x40] sm:$0xff]
    %v512 = vld [vmem:[#allocation13 + $0x48] sm:$0xff]
    %v513 = vld [vmem:[#allocation13 + $0x50] sm:$0xff]
    %v514 = vld [vmem:[#allocation13 + $0x58] sm:$0xff]
    %v515 = vld [vmem:[#allocation13 + $0x60] sm:$0xff]
    %v516 = vld [vmem:[#allocation13 + $0x68] sm:$0xff]
    %v517 = vld [vmem:[#allocation13 + $0x70] sm:$0xff]
    %v518 = vld [vmem:[#allocation13 + $0x78] sm:$0xff]
    %v519 = vld [vmem:[#allocation5 + $0x4] sm:$0x1]
    %v520 = vlaneseq
    %v521 = vshrl.u32 %v520, 7
    %v522 = vsub.s32 0, %v521
    %v523 = vrot.slane %v519, %v522
    %524 = vmatprep.subr.mxu0 0.0
    %525 = vmatpush1.msra.mxu0 %v518
    %526 = vmatprep.subr.mxu0 0.0
    %527 = vmatpush1.msra.mxu0 %v517
    %528 = vmatprep.subr.mxu0 0.0
    %529 = vmatpush1.msra.mxu0 %v516
    %530 = vmatprep.subr.mxu0 0.0
    %531 = vmatpush1.msra.mxu0 %v515
    %532 = vmatprep.subr.mxu0 0.0
    %533 = vmatpush1.msra.mxu0 %v514
    %534 = vmatprep.subr.mxu0 0.0
    %535 = vmatpush1.msra.mxu0 %v513
    %536 = vmatprep.subr.mxu0 0.0
    %537 = vmatpush1.msra.mxu0 %v512
    %538 = vmatprep.subr.mxu0 0.0
    %539 = vmatpush1.msra.mxu0 %v511
    %540 = vmatprep.subr.mxu0 0.0
    %541 = vmatpush1.msra.mxu0 %v510
    %542 = vmatprep.subr.mxu0 0.0
    %543 = vmatpush1.msra.mxu0 %v509
    %544 = vmatprep.subr.mxu0 0.0
    %545 = vmatpush1.msra.mxu0 %v508
    %546 = vmatprep.subr.mxu0 0.0
    %547 = vmatpush1.msra.mxu0 %v507
    %548 = vmatprep.subr.mxu0 0.0
    %549 = vmatpush1.msra.mxu0 %v506
    %550 = vmatprep.subr.mxu0 0.0
    %551 = vmatpush1.msra.mxu0 %v505
    %552 = vmatprep.subr.mxu0 0.0
    %553 = vmatpush1.msra.mxu0 %v504
    %554 = vmatprep.subr.mxu0 0.0
    %555 = vmatpush1.msra.mxu0 %v503
    %556 = vmatprep.subr.mxu0 0.0
    %557 = vmatpush2.msra.mxu0 0.0
    %558 = vmatprep.subr.mxu0 0.0
    %559 = vmatpush2.msra.mxu0 0.0
    %560 = vmatprep.subr.mxu0 0.0
    %561 = vmatpush2.msra.mxu0 0.0
    %562 = vmatprep.subr.mxu0 0.0
    %563 = vmatpush2.msra.mxu0 0.0
    %564 = vmatprep.subr.mxu0 0.0
    %565 = vmatpush2.msra.mxu0 0.0
    %566 = vmatprep.subr.mxu0 0.0
    %567 = vmatpush2.msra.mxu0 0.0
    %568 = vmatprep.subr.mxu0 0.0
    %569 = vmatpush2.msra.mxu0 0.0
    %570 = vmatprep.subr.mxu0 0.0
    %571 = vmatpush2.msra.mxu0 0.0
    %572 = vmatprep.subr.mxu0 0.0
    %573 = vmatpush2.msra.mxu0 0.0
    %574 = vmatprep.subr.mxu0 0.0
    %575 = vmatpush2.msra.mxu0 0.0
    %576 = vmatprep.subr.mxu0 0.0
    %577 = vmatpush2.msra.mxu0 0.0
    %578 = vmatprep.subr.mxu0 0.0
    %579 = vmatpush2.msra.mxu0 0.0
    %580 = vmatprep.subr.mxu0 0.0
    %581 = vmatpush2.msra.mxu0 0.0
    %582 = vmatprep.subr.mxu0 0.0
    %583 = vmatpush2.msra.mxu0 0.0
    %584 = vmatprep.subr.mxu0 0.0
    %585 = vmatpush2.msra.mxu0 0.0
    %586 = vmatprep.subr.mxu0 0.0
    %587 = vmatpush2.msra.mxu0 0.0
    %588 = vmatprep.mubr.f32.mxu0 0.0
    %589 = vmatmul.mubr.f32.gmra.mxu0 %v502
    %v590 = vpop.f32.mrf.mxu0
    %v591 = vadd.f32 %v523, %v590
    %v592 = vpop.f32.mrf.mxu0
    %593 = vdwg.mxu0
    %v594 = vmax.f32 %v591, 0.0
    %v595 = vld [vmem:[#allocation14] sm:$0xff]
    %v596 = vld [vmem:[#allocation14 + $0x8] sm:$0xff]
    %v597 = vld [vmem:[#allocation14 + $0x10] sm:$0xff]
    %v598 = vld [vmem:[#allocation14 + $0x18] sm:$0xff]
    %v599 = vld [vmem:[#allocation14 + $0x20] sm:$0xff]
    %v600 = vld [vmem:[#allocation14 + $0x28] sm:$0xff]
    %v601 = vld [vmem:[#allocation14 + $0x30] sm:$0xff]
    %v602 = vld [vmem:[#allocation14 + $0x38] sm:$0xff]
    %v603 = vld [vmem:[#allocation14 + $0x40] sm:$0xff]
    %v604 = vld [vmem:[#allocation14 + $0x48] sm:$0xff]
    %v605 = vld [vmem:[#allocation14 + $0x50] sm:$0xff]
    %v606 = vld [vmem:[#allocation14 + $0x58] sm:$0xff]
    %v607 = vld [vmem:[#allocation14 + $0x60] sm:$0xff]
    %v608 = vld [vmem:[#allocation14 + $0x68] sm:$0xff]
    %v609 = vld [vmem:[#allocation14 + $0x70] sm:$0xff]
    %v610 = vld [vmem:[#allocation14 + $0x78] sm:$0xff]
    %v611 = vld [vmem:[#allocation5 + $0x5] sm:$0x1]
    %v612 = vlaneseq
    %v613 = vshrl.u32 %v612, 7
    %v614 = vsub.s32 0, %v613
    %v615 = vrot.slane %v611, %v614
    %616 = vmatprep.subr.mxu0 0.0
    %617 = vmatpush1.msra.mxu0 %v610
    %618 = vmatprep.subr.mxu0 0.0
    %619 = vmatpush1.msra.mxu0 %v609
    %620 = vmatprep.subr.mxu0 0.0
    %621 = vmatpush1.msra.mxu0 %v608
    %622 = vmatprep.subr.mxu0 0.0
    %623 = vmatpush1.msra.mxu0 %v607
    %624 = vmatprep.subr.mxu0 0.0
    %625 = vmatpush1.msra.mxu0 %v606
    %626 = vmatprep.subr.mxu0 0.0
    %627 = vmatpush1.msra.mxu0 %v605
    %628 = vmatprep.subr.mxu0 0.0
    %629 = vmatpush1.msra.mxu0 %v604
    %630 = vmatprep.subr.mxu0 0.0
    %631 = vmatpush1.msra.mxu0 %v603
    %632 = vmatprep.subr.mxu0 0.0
    %633 = vmatpush1.msra.mxu0 %v602
    %634 = vmatprep.subr.mxu0 0.0
    %635 = vmatpush1.msra.mxu0 %v601
    %636 = vmatprep.subr.mxu0 0.0
    %637 = vmatpush1.msra.mxu0 %v600
    %638 = vmatprep.subr.mxu0 0.0
    %639 = vmatpush1.msra.mxu0 %v599
    %640 = vmatprep.subr.mxu0 0.0
    %641 = vmatpush1.msra.mxu0 %v598
    %642 = vmatprep.subr.mxu0 0.0
    %643 = vmatpush1.msra.mxu0 %v597
    %644 = vmatprep.subr.mxu0 0.0
    %645 = vmatpush1.msra.mxu0 %v596
    %646 = vmatprep.subr.mxu0 0.0
    %647 = vmatpush1.msra.mxu0 %v595
    %648 = vmatprep.subr.mxu0 0.0
    %649 = vmatpush2.msra.mxu0 0.0
    %650 = vmatprep.subr.mxu0 0.0
    %651 = vmatpush2.msra.mxu0 0.0
    %652 = vmatprep.subr.mxu0 0.0
    %653 = vmatpush2.msra.mxu0 0.0
    %654 = vmatprep.subr.mxu0 0.0
    %655 = vmatpush2.msra.mxu0 0.0
    %656 = vmatprep.subr.mxu0 0.0
    %657 = vmatpush2.msra.mxu0 0.0
    %658 = vmatprep.subr.mxu0 0.0
    %659 = vmatpush2.msra.mxu0 0.0
    %660 = vmatprep.subr.mxu0 0.0
    %661 = vmatpush2.msra.mxu0 0.0
    %662 = vmatprep.subr.mxu0 0.0
    %663 = vmatpush2.msra.mxu0 0.0
    %664 = vmatprep.subr.mxu0 0.0
    %665 = vmatpush2.msra.mxu0 0.0
    %666 = vmatprep.subr.mxu0 0.0
    %667 = vmatpush2.msra.mxu0 0.0
    %668 = vmatprep.subr.mxu0 0.0
    %669 = vmatpush2.msra.mxu0 0.0
    %670 = vmatprep.subr.mxu0 0.0
    %671 = vmatpush2.msra.mxu0 0.0
    %672 = vmatprep.subr.mxu0 0.0
    %673 = vmatpush2.msra.mxu0 0.0
    %674 = vmatprep.subr.mxu0 0.0
    %675 = vmatpush2.msra.mxu0 0.0
    %676 = vmatprep.subr.mxu0 0.0
    %677 = vmatpush2.msra.mxu0 0.0
    %678 = vmatprep.subr.mxu0 0.0
    %679 = vmatpush2.msra.mxu0 0.0
    %680 = vmatprep.mubr.f32.mxu0 0.0
    %681 = vmatmul.mubr.f32.gmra.mxu0 %v594
    %v682 = vpop.f32.mrf.mxu0
    %v683 = vadd.f32 %v615, %v682
    %v684 = vpop.f32.mrf.mxu0
    %685 = vdwg.mxu0
    %686 = vst [vmem:[#allocation16] sm:$0xff] %v683
    // Predicated region
    $region66: #{tpu_custom_call.1} parent=1 // pred_check
      _
    $region67: #{tpu_custom_call.1} parent=1 // pred_check_branch
      %688 = sbr.rel (0) target = $region69
    $region68: #{tpu_custom_call.1} parent=1 // pred_region
      %s690 = ssub.s32 128, 128
      %691 = vsyncadd [#allocation4], %s690
      %s693 = sshll.u32 [#allocation16], 4
      %s694 = int_to_ptr.vmem [resolvable:$true] %s693
      %696 = dma.vmem_to_hbm [thread:$0]  %s694, 128, %s8, [#allocation4]
    $region69: #{tpu_custom_call.1} parent=1 // pred_fallthru
      _
    // Predicated region
    $region70: #{tpu_custom_call.1} parent=1 // pred_check
      _
    $region71: #{tpu_custom_call.1} parent=1 // pred_check_branch
      %698 = sbr.rel (0) target = $region73
    $region72: #{tpu_custom_call.1} parent=1 // pred_region
      %699 = dma.done [#allocation4], 128
    $region73: #{tpu_custom_call.1} parent=1 // pred_fallthru
      _
    %700 = vsyncpa [#allocation3], 1
    %701 = vsyncpa [#allocation6], 1
    %702 = vsyncpa [#allocation9], 1
    %703 = vsyncpa [#allocation12], 1
    %704 = vsyncpa [#allocation15], 1
    %705 = vsyncpa [#allocation4], 1

</llo_original>
